<compile_context>
chip_gen: v5e
topology: v5e:2x2
jax: 0.10.0
libtpu: 0.0.40
codegen_flags: <defaults>
</compile_context>

<pallas_src>
import jax
import jax.numpy as jnp
from jax.experimental import pallas as pl
from jax.experimental.pallas import tpu as pltpu

# ---- small, tutorial-consistent hyperparameters ----
SRC_VOCAB = 16
D_MODEL   = 32
D_FF      = 64
D_K = D_V = 8
N_HEADS   = 4
N_LAYERS  = 2
BATCH     = 2
SEQ       = 8
EPS       = 1e-5


def _layer_norm(x):
    # nn.LayerNorm(d_model) constructed fresh in forward => weight=1, bias=0
    mean = jnp.mean(x, axis=-1, keepdims=True)
    var = jnp.mean(jnp.square(x - mean), axis=-1, keepdims=True)
    return (x - mean) * jax.lax.rsqrt(var + EPS)


# ---------------- fused encoder-stack kernel (all layers, one batch element per grid step) ----------------

def encoder_stack_kernel(x_ref, bias_ref, wqkv_ref, wo_ref, w1_ref, w2_ref,
                         out_ref, *attn_refs):
    x = x_ref[0]            # (S, D)
    bias = bias_ref[0]      # (S, S) additive pad bias (0 / -1e9), computed once in wrapper

    for l in range(N_LAYERS):   # static unroll: x stays in VMEM/vregs across layers
        # fused QKV projection: one MXU push (scale already folded into W_Q)
        qkv = jnp.dot(x, wqkv_ref[l], preferred_element_type=jnp.float32)   # (S, 3*H*Dk)

        def heads(base):
            # move heads off the lane axis onto a leading batch axis: (H, S, Dk)
            return jnp.stack(
                [qkv[:, base + h * D_K: base + (h + 1) * D_K] for h in range(N_HEADS)],
                axis=0)

        qh = heads(0)
        kh = heads(N_HEADS * D_K)
        vh = heads(2 * N_HEADS * D_K)

        # head-batched scores + masked softmax
        scores = jnp.einsum('hqd,hkd->hqk', qh, kh,
                            preferred_element_type=jnp.float32) + bias[None]
        scores = scores - jnp.max(scores, axis=-1, keepdims=True)
        e = jnp.exp(scores)
        attn = e * pl.reciprocal(jnp.sum(e, axis=-1, keepdims=True), approx=True)
        attn_refs[l][0] = attn                                              # one store per layer

        # head-batched context and output projection (sum over heads instead of concat)
        ctx = jnp.einsum('hqk,hkd->hqd', attn, vh,
                         preferred_element_type=jnp.float32)                # (H, S, Dv)
        proj = jnp.einsum('hsd,hdm->hsm', ctx, wo_ref[l],
                          preferred_element_type=jnp.float32)               # (H, S, D)
        y = _layer_norm(jnp.sum(proj, axis=0) + x)                          # residual + LN

        # position-wise FFN
        h1 = jnp.maximum(jnp.dot(y, w1_ref[l], preferred_element_type=jnp.float32), 0.0)
        h2 = jnp.dot(h1, w2_ref[l], preferred_element_type=jnp.float32)
        x = _layer_norm(h2 + y)                                             # residual + LN

    out_ref[0] = x


# ---------------- wrapper: embedding, positional encoding, mask, weight packing, one pallas_call ----------------

def positional_encoding(seq_len, d_model):
    pos = jnp.arange(seq_len, dtype=jnp.float32)[:, None]
    i = jnp.arange(0, d_model, 2, dtype=jnp.float32)
    div = jnp.exp(-jnp.log(10000.0) * i / d_model)
    pe = jnp.zeros((seq_len, d_model), jnp.float32)
    pe = pe.at[:, 0::2].set(jnp.sin(pos * div))
    pe = pe.at[:, 1::2].set(jnp.cos(pos * div))
    return pe


@jax.jit
def encoder_forward(tokens, emb_table, layer_params):
    B, S = tokens.shape
    D = emb_table.shape[1]

    # glue (fused by XLA under jit): embedding lookup + PE add + additive pad-mask bias
    # TODO(synk): dropout inside PositionalEncoding is eval-mode identity here.
    x = emb_table[tokens] + positional_encoding(S, D)[None]                 # (B, S, D)
    pad = (tokens == 0)[:, None, :]                                         # key-is-PAD
    bias = jnp.broadcast_to(jnp.where(pad, jnp.float32(-1e9), jnp.float32(0.0)),
                            (B, S, S))

    # pack weights: fused QKV (with 1/sqrt(dk) folded into W_Q), head-major output proj, FFN
    scale = 1.0 / jnp.sqrt(jnp.float32(D_K))
    wqkv = jnp.stack([jnp.concatenate([wq * scale, wk, wv], axis=1)
                      for (wq, wk, wv, wo, w1, w2) in layer_params])        # (L, D, 3*H*Dk)
    wo_h = jnp.stack([wo.reshape(N_HEADS, D_V, D)
                      for (wq, wk, wv, wo, w1, w2) in layer_params])        # (L, H, Dv, D)
    w1s = jnp.stack([p[4] for p in layer_params])                           # (L, D, D_FF)
    w2s = jnp.stack([p[5] for p in layer_params])                           # (L, D_FF, D)

    def full_spec(a):
        nd = a.ndim
        return pl.BlockSpec(a.shape, lambda b: (0,) * nd)

    out_shapes = ((jax.ShapeDtypeStruct((B, S, D), jnp.float32),)
                  + tuple(jax.ShapeDtypeStruct((B, N_HEADS, S, S), jnp.float32)
                          for _ in range(N_LAYERS)))
    out_specs = ([pl.BlockSpec((1, S, D), lambda b: (b, 0, 0))]
                 + [pl.BlockSpec((1, N_HEADS, S, S), lambda b: (b, 0, 0, 0))
                    for _ in range(N_LAYERS)])

    results = pl.pallas_call(
        encoder_stack_kernel,
        out_shape=out_shapes,
        grid_spec=pltpu.PrefetchScalarGridSpec(
            num_scalar_prefetch=0,
            grid=(B,),
            in_specs=[pl.BlockSpec((1, S, D), lambda b: (b, 0, 0)),
                      pl.BlockSpec((1, S, S), lambda b: (b, 0, 0)),
                      full_spec(wqkv), full_spec(wo_h),
                      full_spec(w1s), full_spec(w2s)],
            out_specs=out_specs),
        compiler_params=pltpu.CompilerParams(dimension_semantics=("parallel",)),
    )(x, bias, wqkv, wo_h, w1s, w2s)

    enc_out, attns = results[0], list(results[1:])
    return enc_out, attns


# ---------------- pure-JAX reference for verification ----------------

def get_attn_pad_mask(seq_q, seq_k):
    pad = (seq_k == 0)[:, None, :]
    return jnp.broadcast_to(pad, (seq_q.shape[0], seq_q.shape[1], seq_k.shape[1]))


def ref_layer(x, pad_bool, params):
    wq, wk, wv, wo, w1, w2 = params
    B, S, D = x.shape
    q = (x @ wq).reshape(B, S, N_HEADS, D_K).transpose(0, 2, 1, 3)
    k = (x @ wk).reshape(B, S, N_HEADS, D_K).transpose(0, 2, 1, 3)
    v = (x @ wv).reshape(B, S, N_HEADS, D_V).transpose(0, 2, 1, 3)
    scores = jnp.einsum('bhqd,bhkd->bhqk', q, k) / jnp.sqrt(jnp.float32(D_K))
    scores = jnp.where(pad_bool[:, None, :, :], -1e9, scores)
    attn = jax.nn.softmax(scores, axis=-1)
    ctx = jnp.einsum('bhqk,bhkd->bhqd', attn, v).transpose(0, 2, 1, 3).reshape(B, S, N_HEADS * D_V)
    y = _layer_norm(ctx @ wo + x)
    out = _layer_norm(jnp.maximum(y @ w1, 0.0) @ w2 + y)
    return out, attn


def ref_encoder(tokens, emb_table, layer_params):
    x = emb_table[tokens] + positional_encoding(SEQ, D_MODEL)[None]
    pad = get_attn_pad_mask(tokens, tokens)
    attns = []
    for p in layer_params:
        x, a = ref_layer(x, pad, p)
        attns.append(a)
    return x, attns


# ---------------- deterministic parameter init ----------------

def init_params(key):
    k_emb, *k_layers = jax.random.split(key, 1 + N_LAYERS)
    emb_table = jax.random.normal(k_emb, (SRC_VOCAB, D_MODEL), jnp.float32)
    layer_params = []
    for kl in k_layers:
        ks = jax.random.split(kl, 6)
        layer_params.append((
            0.1 * jax.random.normal(ks[0], (D_MODEL, N_HEADS * D_K), jnp.float32),  # W_Q
            0.1 * jax.random.normal(ks[1], (D_MODEL, N_HEADS * D_K), jnp.float32),  # W_K
            0.1 * jax.random.normal(ks[2], (D_MODEL, N_HEADS * D_V), jnp.float32),  # W_V
            0.1 * jax.random.normal(ks[3], (N_HEADS * D_V, D_MODEL), jnp.float32),  # fc
            0.1 * jax.random.normal(ks[4], (D_MODEL, D_FF), jnp.float32),           # ffn W1
            0.1 * jax.random.normal(ks[5], (D_FF, D_MODEL), jnp.float32),           # ffn W2
        ))
    return emb_table, layer_params


if __name__ == "__main__":
    key = jax.random.PRNGKey(0)
    k_param, k_tok = jax.random.split(key)
    emb_table, layer_params = init_params(k_param)

    # token ids in [1, vocab), with explicit PAD (0) tokens at the tail
    tokens = jax.random.randint(k_tok, (BATCH, SEQ), 1, SRC_VOCAB)
    tokens = tokens.at[:, -2:].set(0)

    enc_out, enc_attns = encoder_forward(tokens, emb_table, layer_params)
    enc_out = jax.block_until_ready(enc_out)
    enc_attns = [jax.block_until_ready(a) for a in enc_attns]

    # verify against pure-JAX reference (tolerance loosened slightly for approx reciprocal in softmax)
    ref_out, ref_attns = ref_encoder(tokens, emb_table, layer_params)
    assert jnp.allclose(enc_out, ref_out, atol=2e-3, rtol=2e-3), \
        float(jnp.max(jnp.abs(enc_out - ref_out)))
    for a, r in zip(enc_attns, ref_attns):
        assert jnp.allclose(a, r, atol=2e-3, rtol=2e-3), \
            float(jnp.max(jnp.abs(a - r)))

    print("KERNEL_OK")
</pallas_src>

<mosaic_0001>
module attributes {stable_mosaic.version = 11 : i64} {
  func.func @encoder_stack_kernel(%arg0: i32, %arg1: memref<1x8x32xf32, #tpu.memory_space<vmem>>, %arg2: memref<1x8x8xf32, #tpu.memory_space<vmem>>, %arg3: memref<2x32x96xf32, #tpu.memory_space<vmem>>, %arg4: memref<2x4x8x32xf32, #tpu.memory_space<vmem>>, %arg5: memref<2x32x64xf32, #tpu.memory_space<vmem>>, %arg6: memref<2x64x32xf32, #tpu.memory_space<vmem>>, %arg7: memref<1x8x32xf32, #tpu.memory_space<vmem>>, %arg8: memref<1x4x8x8xf32, #tpu.memory_space<vmem>>, %arg9: memref<1x4x8x8xf32, #tpu.memory_space<vmem>>) attributes {dimension_semantics = [#tpu.dimension_semantics<parallel>], iteration_bounds = array<i64: 2>, scalar_prefetch = 0 : i64, scratch_operands = 0 : i64, tpu.core_type = #tpu.core_type<tc>, window_params = [{transform_indices = @transform_0, window_bounds = array<i64: 1, 8, 32>}, {transform_indices = @transform_1, window_bounds = array<i64: 1, 8, 8>}, {pipeline_mode = #tpu.pipeline_mode<synchronous>, transform_indices = @transform_2, window_bounds = array<i64: 2, 32, 96>}, {pipeline_mode = #tpu.pipeline_mode<synchronous>, transform_indices = @transform_3, window_bounds = array<i64: 2, 4, 8, 32>}, {pipeline_mode = #tpu.pipeline_mode<synchronous>, transform_indices = @transform_4, window_bounds = array<i64: 2, 32, 64>}, {pipeline_mode = #tpu.pipeline_mode<synchronous>, transform_indices = @transform_5, window_bounds = array<i64: 2, 64, 32>}, {transform_indices = @transform_6, window_bounds = array<i64: 1, 8, 32>}, {transform_indices = @transform_7, window_bounds = array<i64: 1, 4, 8, 8>}, {transform_indices = @transform_8, window_bounds = array<i64: 1, 4, 8, 8>}]} {
    %c0 = arith.constant 0 : index
    %c0_0 = arith.constant 0 : index
    %c0_1 = arith.constant 0 : index
    %0 = vector.load %arg1[%c0, %c0_0, %c0_1] : memref<1x8x32xf32, #tpu.memory_space<vmem>>, vector<1x8x32xf32>
    %1 = vector.shape_cast %0 : vector<1x8x32xf32> to vector<8x32xf32>
    %c0_2 = arith.constant 0 : index
    %c0_3 = arith.constant 0 : index
    %c0_4 = arith.constant 0 : index
    %2 = vector.load %arg2[%c0_2, %c0_3, %c0_4] : memref<1x8x8xf32, #tpu.memory_space<vmem>>, vector<1x8x8xf32>
    %3 = vector.shape_cast %2 : vector<1x8x8xf32> to vector<8x8xf32>
    %c0_5 = arith.constant 0 : index
    %c0_6 = arith.constant 0 : index
    %c0_7 = arith.constant 0 : index
    %4 = vector.load %arg3[%c0_5, %c0_6, %c0_7] : memref<2x32x96xf32, #tpu.memory_space<vmem>>, vector<1x32x96xf32>
    %5 = vector.shape_cast %4 : vector<1x32x96xf32> to vector<32x96xf32>
    %cst = arith.constant dense<0.000000e+00> : vector<8x96xf32>
    %6 = tpu.matmul %1, %5, %cst {dimension_numbers = #tpu.dot_dimension_numbers<[1], [0], [0], [1], [0, 0, 1, 1], [], []>} : vector<8x32xf32>, vector<32x96xf32>, vector<8x96xf32> -> vector<8x96xf32>
    %7 = vector.extract_strided_slice %6 {offsets = [0, 0], sizes = [8, 8], strides = [1, 1]} : vector<8x96xf32> to vector<8x8xf32>
    %8 = vector.extract_strided_slice %6 {offsets = [0, 8], sizes = [8, 8], strides = [1, 1]} : vector<8x96xf32> to vector<8x8xf32>
    %9 = vector.extract_strided_slice %6 {offsets = [0, 16], sizes = [8, 8], strides = [1, 1]} : vector<8x96xf32> to vector<8x8xf32>
    %10 = vector.extract_strided_slice %6 {offsets = [0, 24], sizes = [8, 8], strides = [1, 1]} : vector<8x96xf32> to vector<8x8xf32>
    %11 = vector.shape_cast %7 : vector<8x8xf32> to vector<1x8x8xf32>
    %12 = vector.shape_cast %8 : vector<8x8xf32> to vector<1x8x8xf32>
    %13 = vector.shape_cast %9 : vector<8x8xf32> to vector<1x8x8xf32>
    %14 = vector.shape_cast %10 : vector<8x8xf32> to vector<1x8x8xf32>
    %15 = tpu.concatenate %11, %12, %13, %14 in 0 : vector<1x8x8xf32>, vector<1x8x8xf32>, vector<1x8x8xf32>, vector<1x8x8xf32> -> vector<4x8x8xf32>
    %16 = vector.extract_strided_slice %6 {offsets = [0, 32], sizes = [8, 8], strides = [1, 1]} : vector<8x96xf32> to vector<8x8xf32>
    %17 = vector.extract_strided_slice %6 {offsets = [0, 40], sizes = [8, 8], strides = [1, 1]} : vector<8x96xf32> to vector<8x8xf32>
    %18 = vector.extract_strided_slice %6 {offsets = [0, 48], sizes = [8, 8], strides = [1, 1]} : vector<8x96xf32> to vector<8x8xf32>
    %19 = vector.extract_strided_slice %6 {offsets = [0, 56], sizes = [8, 8], strides = [1, 1]} : vector<8x96xf32> to vector<8x8xf32>
    %20 = vector.shape_cast %16 : vector<8x8xf32> to vector<1x8x8xf32>
    %21 = vector.shape_cast %17 : vector<8x8xf32> to vector<1x8x8xf32>
    %22 = vector.shape_cast %18 : vector<8x8xf32> to vector<1x8x8xf32>
    %23 = vector.shape_cast %19 : vector<8x8xf32> to vector<1x8x8xf32>
    %24 = tpu.concatenate %20, %21, %22, %23 in 0 : vector<1x8x8xf32>, vector<1x8x8xf32>, vector<1x8x8xf32>, vector<1x8x8xf32> -> vector<4x8x8xf32>
    %25 = vector.extract_strided_slice %6 {offsets = [0, 64], sizes = [8, 8], strides = [1, 1]} : vector<8x96xf32> to vector<8x8xf32>
    %26 = vector.extract_strided_slice %6 {offsets = [0, 72], sizes = [8, 8], strides = [1, 1]} : vector<8x96xf32> to vector<8x8xf32>
    %27 = vector.extract_strided_slice %6 {offsets = [0, 80], sizes = [8, 8], strides = [1, 1]} : vector<8x96xf32> to vector<8x8xf32>
    %28 = vector.extract_strided_slice %6 {offsets = [0, 88], sizes = [8, 8], strides = [1, 1]} : vector<8x96xf32> to vector<8x8xf32>
    %29 = vector.shape_cast %25 : vector<8x8xf32> to vector<1x8x8xf32>
    %30 = vector.shape_cast %26 : vector<8x8xf32> to vector<1x8x8xf32>
    %31 = vector.shape_cast %27 : vector<8x8xf32> to vector<1x8x8xf32>
    %32 = vector.shape_cast %28 : vector<8x8xf32> to vector<1x8x8xf32>
    %33 = tpu.concatenate %29, %30, %31, %32 in 0 : vector<1x8x8xf32>, vector<1x8x8xf32>, vector<1x8x8xf32>, vector<1x8x8xf32> -> vector<4x8x8xf32>
    "tpu.trace_start"() <{level = 10 : i32, message = "hqd,hkd->hqk"}> : () -> ()
    %cst_8 = arith.constant dense<0.000000e+00> : vector<4x8x8xf32>
    %34 = tpu.matmul %15, %24, %cst_8 {dimension_numbers = #tpu.dot_dimension_numbers<[2], [2], [1], [1], [0, 0, 0, 1, 1, 1], [0], [0]>} : vector<4x8x8xf32>, vector<4x8x8xf32>, vector<4x8x8xf32> -> vector<4x8x8xf32>
    "tpu.trace_stop"() : () -> ()
    %35 = vector.shape_cast %3 : vector<8x8xf32> to vector<1x8x8xf32>
    %36 = vector.broadcast %35 : vector<1x8x8xf32> to vector<4x8x8xf32>
    %37 = arith.addf %34, %36 : vector<4x8x8xf32>
    %cst_9 = arith.constant dense<0xFF800000> : vector<4x8xf32>
    %38 = vector.multi_reduction <maximumf>, %37, %cst_9 [2] : vector<4x8x8xf32> to vector<4x8xf32>
    %39 = vector.shape_cast %38 : vector<4x8xf32> to vector<4x8x1xf32>
    %40 = vector.broadcast %39 : vector<4x8x1xf32> to vector<4x8x8xf32>
    %41 = arith.subf %37, %40 : vector<4x8x8xf32>
    %42 = math.exp %41 : vector<4x8x8xf32>
    %cst_10 = arith.constant dense<0.000000e+00> : vector<4x8xf32>
    %43 = vector.multi_reduction <add>, %42, %cst_10 [2] : vector<4x8x8xf32> to vector<4x8xf32>
    %44 = vector.shape_cast %43 : vector<4x8xf32> to vector<4x8x1xf32>
    %45 = tpu.reciprocal %44 {approx = true} : vector<4x8x1xf32> -> vector<4x8x1xf32>
    %46 = vector.broadcast %45 : vector<4x8x1xf32> to vector<4x8x8xf32>
    %47 = arith.mulf %42, %46 : vector<4x8x8xf32>
    %c0_11 = arith.constant 0 : index
    %c0_12 = arith.constant 0 : index
    %c0_13 = arith.constant 0 : index
    %c0_14 = arith.constant 0 : index
    %48 = vector.load %arg8[%c0_11, %c0_12, %c0_13, %c0_14] : memref<1x4x8x8xf32, #tpu.memory_space<vmem>>, vector<1x4x8x8xf32>
    %49 = vector.shape_cast %48 : vector<1x4x8x8xf32> to vector<4x8x8xf32>
    %50 = vector.shape_cast %47 : vector<4x8x8xf32> to vector<1x4x8x8xf32>
    tpu.vector_store %arg8[%c0_11, %c0_12, %c0_13, %c0_14], %50 {strides = array<i32>} : memref<1x4x8x8xf32, #tpu.memory_space<vmem>>, vector<1x4x8x8xf32>,
    "tpu.trace_start"() <{level = 10 : i32, message = "hqk,hkd->hqd"}> : () -> ()
    %cst_15 = arith.constant dense<0.000000e+00> : vector<4x8x8xf32>
    %51 = tpu.matmul %47, %33, %cst_15 {dimension_numbers = #tpu.dot_dimension_numbers<[2], [1], [1], [2], [0, 0, 0, 1, 1, 2], [0], [0]>} : vector<4x8x8xf32>, vector<4x8x8xf32>, vector<4x8x8xf32> -> vector<4x8x8xf32>
    "tpu.trace_stop"() : () -> ()
    %c0_16 = arith.constant 0 : index
    %c0_17 = arith.constant 0 : index
    %c0_18 = arith.constant 0 : index
    %c0_19 = arith.constant 0 : index
    %52 = vector.load %arg4[%c0_16, %c0_17, %c0_18, %c0_19] : memref<2x4x8x32xf32, #tpu.memory_space<vmem>>, vector<1x4x8x32xf32>
    %53 = vector.shape_cast %52 : vector<1x4x8x32xf32> to vector<4x8x32xf32>
    "tpu.trace_start"() <{level = 10 : i32, message = "hsd,hdm->hsm"}> : () -> ()
    %cst_20 = arith.constant dense<0.000000e+00> : vector<4x8x32xf32>
    %54 = tpu.matmul %51, %53, %cst_20 {dimension_numbers = #tpu.dot_dimension_numbers<[2], [1], [1], [2], [0, 0, 0, 1, 1, 2], [0], [0]>} : vector<4x8x8xf32>, vector<4x8x32xf32>, vector<4x8x32xf32> -> vector<4x8x32xf32>
    "tpu.trace_stop"() : () -> ()
    %cst_21 = arith.constant dense<0.000000e+00> : vector<8x32xf32>
    %55 = vector.multi_reduction <add>, %54, %cst_21 [0] : vector<4x8x32xf32> to vector<8x32xf32>
    %56 = arith.addf %55, %1 : vector<8x32xf32>
    %cst_22 = arith.constant dense<0.000000e+00> : vector<8xf32>
    %57 = vector.multi_reduction <add>, %56, %cst_22 [1] : vector<8x32xf32> to vector<8xf32>
    %58 = vector.shape_cast %57 : vector<8xf32> to vector<8x1xf32>
    %cst_23 = arith.constant 3.200000e+01 : f32
    %59 = vector.broadcast %cst_23 : f32 to vector<8x1xf32>
    %60 = arith.divf %58, %59 : vector<8x1xf32>
    %61 = vector.broadcast %60 : vector<8x1xf32> to vector<8x32xf32>
    %62 = arith.subf %56, %61 : vector<8x32xf32>
    %63 = arith.mulf %62, %62 : vector<8x32xf32>
    %cst_24 = arith.constant dense<0.000000e+00> : vector<8xf32>
    %64 = vector.multi_reduction <add>, %63, %cst_24 [1] : vector<8x32xf32> to vector<8xf32>
    %65 = vector.shape_cast %64 : vector<8xf32> to vector<8x1xf32>
    %cst_25 = arith.constant 3.200000e+01 : f32
    %66 = vector.broadcast %cst_25 : f32 to vector<8x1xf32>
    %67 = arith.divf %65, %66 : vector<8x1xf32>
    %68 = vector.broadcast %60 : vector<8x1xf32> to vector<8x32xf32>
    %69 = arith.subf %56, %68 : vector<8x32xf32>
    %cst_26 = arith.constant 9.99999974E-6 : f32
    %70 = vector.broadcast %cst_26 : f32 to vector<8x1xf32>
    %71 = arith.addf %67, %70 : vector<8x1xf32>
    %72 = math.rsqrt %71 : vector<8x1xf32>
    %73 = vector.broadcast %72 : vector<8x1xf32> to vector<8x32xf32>
    %74 = arith.mulf %69, %73 : vector<8x32xf32>
    %c0_27 = arith.constant 0 : index
    %c0_28 = arith.constant 0 : index
    %c0_29 = arith.constant 0 : index
    %75 = vector.load %arg5[%c0_27, %c0_28, %c0_29] : memref<2x32x64xf32, #tpu.memory_space<vmem>>, vector<1x32x64xf32>
    %76 = vector.shape_cast %75 : vector<1x32x64xf32> to vector<32x64xf32>
    %cst_30 = arith.constant dense<0.000000e+00> : vector<8x64xf32>
    %77 = tpu.matmul %74, %76, %cst_30 {dimension_numbers = #tpu.dot_dimension_numbers<[1], [0], [0], [1], [0, 0, 1, 1], [], []>} : vector<8x32xf32>, vector<32x64xf32>, vector<8x64xf32> -> vector<8x64xf32>
    %cst_31 = arith.constant 0.000000e+00 : f32
    %78 = vector.broadcast %cst_31 : f32 to vector<8x64xf32>
    %79 = arith.maximumf %77, %78 : vector<8x64xf32>
    %c0_32 = arith.constant 0 : index
    %c0_33 = arith.constant 0 : index
    %c0_34 = arith.constant 0 : index
    %80 = vector.load %arg6[%c0_32, %c0_33, %c0_34] : memref<2x64x32xf32, #tpu.memory_space<vmem>>, vector<1x64x32xf32>
    %81 = vector.shape_cast %80 : vector<1x64x32xf32> to vector<64x32xf32>
    %cst_35 = arith.constant dense<0.000000e+00> : vector<8x32xf32>
    %82 = tpu.matmul %79, %81, %cst_35 {dimension_numbers = #tpu.dot_dimension_numbers<[1], [0], [0], [1], [0, 0, 1, 1], [], []>} : vector<8x64xf32>, vector<64x32xf32>, vector<8x32xf32> -> vector<8x32xf32>
    %83 = arith.addf %82, %74 : vector<8x32xf32>
    %cst_36 = arith.constant dense<0.000000e+00> : vector<8xf32>
    %84 = vector.multi_reduction <add>, %83, %cst_36 [1] : vector<8x32xf32> to vector<8xf32>
    %85 = vector.shape_cast %84 : vector<8xf32> to vector<8x1xf32>
    %cst_37 = arith.constant 3.200000e+01 : f32
    %86 = vector.broadcast %cst_37 : f32 to vector<8x1xf32>
    %87 = arith.divf %85, %86 : vector<8x1xf32>
    %88 = vector.broadcast %87 : vector<8x1xf32> to vector<8x32xf32>
    %89 = arith.subf %83, %88 : vector<8x32xf32>
    %90 = arith.mulf %89, %89 : vector<8x32xf32>
    %cst_38 = arith.constant dense<0.000000e+00> : vector<8xf32>
    %91 = vector.multi_reduction <add>, %90, %cst_38 [1] : vector<8x32xf32> to vector<8xf32>
    %92 = vector.shape_cast %91 : vector<8xf32> to vector<8x1xf32>
    %cst_39 = arith.constant 3.200000e+01 : f32
    %93 = vector.broadcast %cst_39 : f32 to vector<8x1xf32>
    %94 = arith.divf %92, %93 : vector<8x1xf32>
    %95 = vector.broadcast %87 : vector<8x1xf32> to vector<8x32xf32>
    %96 = arith.subf %83, %95 : vector<8x32xf32>
    %cst_40 = arith.constant 9.99999974E-6 : f32
    %97 = vector.broadcast %cst_40 : f32 to vector<8x1xf32>
    %98 = arith.addf %94, %97 : vector<8x1xf32>
    %99 = math.rsqrt %98 : vector<8x1xf32>
    %100 = vector.broadcast %99 : vector<8x1xf32> to vector<8x32xf32>
    %101 = arith.mulf %96, %100 : vector<8x32xf32>
    %c1 = arith.constant 1 : index
    %c0_41 = arith.constant 0 : index
    %c0_42 = arith.constant 0 : index
    %102 = vector.load %arg3[%c1, %c0_41, %c0_42] : memref<2x32x96xf32, #tpu.memory_space<vmem>>, vector<1x32x96xf32>
    %103 = vector.shape_cast %102 : vector<1x32x96xf32> to vector<32x96xf32>
    %cst_43 = arith.constant dense<0.000000e+00> : vector<8x96xf32>
    %104 = tpu.matmul %101, %103, %cst_43 {dimension_numbers = #tpu.dot_dimension_numbers<[1], [0], [0], [1], [0, 0, 1, 1], [], []>} : vector<8x32xf32>, vector<32x96xf32>, vector<8x96xf32> -> vector<8x96xf32>
    %105 = vector.extract_strided_slice %104 {offsets = [0, 0], sizes = [8, 8], strides = [1, 1]} : vector<8x96xf32> to vector<8x8xf32>
    %106 = vector.extract_strided_slice %104 {offsets = [0, 8], sizes = [8, 8], strides = [1, 1]} : vector<8x96xf32> to vector<8x8xf32>
    %107 = vector.extract_strided_slice %104 {offsets = [0, 16], sizes = [8, 8], strides = [1, 1]} : vector<8x96xf32> to vector<8x8xf32>
    %108 = vector.extract_strided_slice %104 {offsets = [0, 24], sizes = [8, 8], strides = [1, 1]} : vector<8x96xf32> to vector<8x8xf32>
    %109 = vector.shape_cast %105 : vector<8x8xf32> to vector<1x8x8xf32>
    %110 = vector.shape_cast %106 : vector<8x8xf32> to vector<1x8x8xf32>
    %111 = vector.shape_cast %107 : vector<8x8xf32> to vector<1x8x8xf32>
    %112 = vector.shape_cast %108 : vector<8x8xf32> to vector<1x8x8xf32>
    %113 = tpu.concatenate %109, %110, %111, %112 in 0 : vector<1x8x8xf32>, vector<1x8x8xf32>, vector<1x8x8xf32>, vector<1x8x8xf32> -> vector<4x8x8xf32>
    %114 = vector.extract_strided_slice %104 {offsets = [0, 32], sizes = [8, 8], strides = [1, 1]} : vector<8x96xf32> to vector<8x8xf32>
    %115 = vector.extract_strided_slice %104 {offsets = [0, 40], sizes = [8, 8], strides = [1, 1]} : vector<8x96xf32> to vector<8x8xf32>
    %116 = vector.extract_strided_slice %104 {offsets = [0, 48], sizes = [8, 8], strides = [1, 1]} : vector<8x96xf32> to vector<8x8xf32>
    %117 = vector.extract_strided_slice %104 {offsets = [0, 56], sizes = [8, 8], strides = [1, 1]} : vector<8x96xf32> to vector<8x8xf32>
    %118 = vector.shape_cast %114 : vector<8x8xf32> to vector<1x8x8xf32>
    %119 = vector.shape_cast %115 : vector<8x8xf32> to vector<1x8x8xf32>
    %120 = vector.shape_cast %116 : vector<8x8xf32> to vector<1x8x8xf32>
    %121 = vector.shape_cast %117 : vector<8x8xf32> to vector<1x8x8xf32>
    %122 = tpu.concatenate %118, %119, %120, %121 in 0 : vector<1x8x8xf32>, vector<1x8x8xf32>, vector<1x8x8xf32>, vector<1x8x8xf32> -> vector<4x8x8xf32>
    %123 = vector.extract_strided_slice %104 {offsets = [0, 64], sizes = [8, 8], strides = [1, 1]} : vector<8x96xf32> to vector<8x8xf32>
    %124 = vector.extract_strided_slice %104 {offsets = [0, 72], sizes = [8, 8], strides = [1, 1]} : vector<8x96xf32> to vector<8x8xf32>
    %125 = vector.extract_strided_slice %104 {offsets = [0, 80], sizes = [8, 8], strides = [1, 1]} : vector<8x96xf32> to vector<8x8xf32>
    %126 = vector.extract_strided_slice %104 {offsets = [0, 88], sizes = [8, 8], strides = [1, 1]} : vector<8x96xf32> to vector<8x8xf32>
    %127 = vector.shape_cast %123 : vector<8x8xf32> to vector<1x8x8xf32>
    %128 = vector.shape_cast %124 : vector<8x8xf32> to vector<1x8x8xf32>
    %129 = vector.shape_cast %125 : vector<8x8xf32> to vector<1x8x8xf32>
    %130 = vector.shape_cast %126 : vector<8x8xf32> to vector<1x8x8xf32>
    %131 = tpu.concatenate %127, %128, %129, %130 in 0 : vector<1x8x8xf32>, vector<1x8x8xf32>, vector<1x8x8xf32>, vector<1x8x8xf32> -> vector<4x8x8xf32>
    "tpu.trace_start"() <{level = 10 : i32, message = "hqd,hkd->hqk"}> : () -> ()
    %cst_44 = arith.constant dense<0.000000e+00> : vector<4x8x8xf32>
    %132 = tpu.matmul %113, %122, %cst_44 {dimension_numbers = #tpu.dot_dimension_numbers<[2], [2], [1], [1], [0, 0, 0, 1, 1, 1], [0], [0]>} : vector<4x8x8xf32>, vector<4x8x8xf32>, vector<4x8x8xf32> -> vector<4x8x8xf32>
    "tpu.trace_stop"() : () -> ()
    %133 = vector.shape_cast %3 : vector<8x8xf32> to vector<1x8x8xf32>
    %134 = vector.broadcast %133 : vector<1x8x8xf32> to vector<4x8x8xf32>
    %135 = arith.addf %132, %134 : vector<4x8x8xf32>
    %cst_45 = arith.constant dense<0xFF800000> : vector<4x8xf32>
    %136 = vector.multi_reduction <maximumf>, %135, %cst_45 [2] : vector<4x8x8xf32> to vector<4x8xf32>
    %137 = vector.shape_cast %136 : vector<4x8xf32> to vector<4x8x1xf32>
    %138 = vector.broadcast %137 : vector<4x8x1xf32> to vector<4x8x8xf32>
    %139 = arith.subf %135, %138 : vector<4x8x8xf32>
    %140 = math.exp %139 : vector<4x8x8xf32>
    %cst_46 = arith.constant dense<0.000000e+00> : vector<4x8xf32>
    %141 = vector.multi_reduction <add>, %140, %cst_46 [2] : vector<4x8x8xf32> to vector<4x8xf32>
    %142 = vector.shape_cast %141 : vector<4x8xf32> to vector<4x8x1xf32>
    %143 = tpu.reciprocal %142 {approx = true} : vector<4x8x1xf32> -> vector<4x8x1xf32>
    %144 = vector.broadcast %143 : vector<4x8x1xf32> to vector<4x8x8xf32>
    %145 = arith.mulf %140, %144 : vector<4x8x8xf32>
    %c0_47 = arith.constant 0 : index
    %c0_48 = arith.constant 0 : index
    %c0_49 = arith.constant 0 : index
    %c0_50 = arith.constant 0 : index
    %146 = vector.load %arg9[%c0_47, %c0_48, %c0_49, %c0_50] : memref<1x4x8x8xf32, #tpu.memory_space<vmem>>, vector<1x4x8x8xf32>
    %147 = vector.shape_cast %146 : vector<1x4x8x8xf32> to vector<4x8x8xf32>
    %148 = vector.shape_cast %145 : vector<4x8x8xf32> to vector<1x4x8x8xf32>
    tpu.vector_store %arg9[%c0_47, %c0_48, %c0_49, %c0_50], %148 {strides = array<i32>} : memref<1x4x8x8xf32, #tpu.memory_space<vmem>>, vector<1x4x8x8xf32>,
    "tpu.trace_start"() <{level = 10 : i32, message = "hqk,hkd->hqd"}> : () -> ()
    %cst_51 = arith.constant dense<0.000000e+00> : vector<4x8x8xf32>
    %149 = tpu.matmul %145, %131, %cst_51 {dimension_numbers = #tpu.dot_dimension_numbers<[2], [1], [1], [2], [0, 0, 0, 1, 1, 2], [0], [0]>} : vector<4x8x8xf32>, vector<4x8x8xf32>, vector<4x8x8xf32> -> vector<4x8x8xf32>
    "tpu.trace_stop"() : () -> ()
    %c1_52 = arith.constant 1 : index
    %c0_53 = arith.constant 0 : index
    %c0_54 = arith.constant 0 : index
    %c0_55 = arith.constant 0 : index
    %150 = vector.load %arg4[%c1_52, %c0_53, %c0_54, %c0_55] : memref<2x4x8x32xf32, #tpu.memory_space<vmem>>, vector<1x4x8x32xf32>
    %151 = vector.shape_cast %150 : vector<1x4x8x32xf32> to vector<4x8x32xf32>
    "tpu.trace_start"() <{level = 10 : i32, message = "hsd,hdm->hsm"}> : () -> ()
    %cst_56 = arith.constant dense<0.000000e+00> : vector<4x8x32xf32>
    %152 = tpu.matmul %149, %151, %cst_56 {dimension_numbers = #tpu.dot_dimension_numbers<[2], [1], [1], [2], [0, 0, 0, 1, 1, 2], [0], [0]>} : vector<4x8x8xf32>, vector<4x8x32xf32>, vector<4x8x32xf32> -> vector<4x8x32xf32>
    "tpu.trace_stop"() : () -> ()
    %cst_57 = arith.constant dense<0.000000e+00> : vector<8x32xf32>
    %153 = vector.multi_reduction <add>, %152, %cst_57 [0] : vector<4x8x32xf32> to vector<8x32xf32>
    %154 = arith.addf %153, %101 : vector<8x32xf32>
    %cst_58 = arith.constant dense<0.000000e+00> : vector<8xf32>
    %155 = vector.multi_reduction <add>, %154, %cst_58 [1] : vector<8x32xf32> to vector<8xf32>
    %156 = vector.shape_cast %155 : vector<8xf32> to vector<8x1xf32>
    %cst_59 = arith.constant 3.200000e+01 : f32
    %157 = vector.broadcast %cst_59 : f32 to vector<8x1xf32>
    %158 = arith.divf %156, %157 : vector<8x1xf32>
    %159 = vector.broadcast %158 : vector<8x1xf32> to vector<8x32xf32>
    %160 = arith.subf %154, %159 : vector<8x32xf32>
    %161 = arith.mulf %160, %160 : vector<8x32xf32>
    %cst_60 = arith.constant dense<0.000000e+00> : vector<8xf32>
    %162 = vector.multi_reduction <add>, %161, %cst_60 [1] : vector<8x32xf32> to vector<8xf32>
    %163 = vector.shape_cast %162 : vector<8xf32> to vector<8x1xf32>
    %cst_61 = arith.constant 3.200000e+01 : f32
    %164 = vector.broadcast %cst_61 : f32 to vector<8x1xf32>
    %165 = arith.divf %163, %164 : vector<8x1xf32>
    %166 = vector.broadcast %158 : vector<8x1xf32> to vector<8x32xf32>
    %167 = arith.subf %154, %166 : vector<8x32xf32>
    %cst_62 = arith.constant 9.99999974E-6 : f32
    %168 = vector.broadcast %cst_62 : f32 to vector<8x1xf32>
    %169 = arith.addf %165, %168 : vector<8x1xf32>
    %170 = math.rsqrt %169 : vector<8x1xf32>
    %171 = vector.broadcast %170 : vector<8x1xf32> to vector<8x32xf32>
    %172 = arith.mulf %167, %171 : vector<8x32xf32>
    %c1_63 = arith.constant 1 : index
    %c0_64 = arith.constant 0 : index
    %c0_65 = arith.constant 0 : index
    %173 = vector.load %arg5[%c1_63, %c0_64, %c0_65] : memref<2x32x64xf32, #tpu.memory_space<vmem>>, vector<1x32x64xf32>
    %174 = vector.shape_cast %173 : vector<1x32x64xf32> to vector<32x64xf32>
    %cst_66 = arith.constant dense<0.000000e+00> : vector<8x64xf32>
    %175 = tpu.matmul %172, %174, %cst_66 {dimension_numbers = #tpu.dot_dimension_numbers<[1], [0], [0], [1], [0, 0, 1, 1], [], []>} : vector<8x32xf32>, vector<32x64xf32>, vector<8x64xf32> -> vector<8x64xf32>
    %cst_67 = arith.constant 0.000000e+00 : f32
    %176 = vector.broadcast %cst_67 : f32 to vector<8x64xf32>
    %177 = arith.maximumf %175, %176 : vector<8x64xf32>
    %c1_68 = arith.constant 1 : index
    %c0_69 = arith.constant 0 : index
    %c0_70 = arith.constant 0 : index
    %178 = vector.load %arg6[%c1_68, %c0_69, %c0_70] : memref<2x64x32xf32, #tpu.memory_space<vmem>>, vector<1x64x32xf32>
    %179 = vector.shape_cast %178 : vector<1x64x32xf32> to vector<64x32xf32>
    %cst_71 = arith.constant dense<0.000000e+00> : vector<8x32xf32>
    %180 = tpu.matmul %177, %179, %cst_71 {dimension_numbers = #tpu.dot_dimension_numbers<[1], [0], [0], [1], [0, 0, 1, 1], [], []>} : vector<8x64xf32>, vector<64x32xf32>, vector<8x32xf32> -> vector<8x32xf32>
    %181 = arith.addf %180, %172 : vector<8x32xf32>
    %cst_72 = arith.constant dense<0.000000e+00> : vector<8xf32>
    %182 = vector.multi_reduction <add>, %181, %cst_72 [1] : vector<8x32xf32> to vector<8xf32>
    %183 = vector.shape_cast %182 : vector<8xf32> to vector<8x1xf32>
    %cst_73 = arith.constant 3.200000e+01 : f32
    %184 = vector.broadcast %cst_73 : f32 to vector<8x1xf32>
    %185 = arith.divf %183, %184 : vector<8x1xf32>
    %186 = vector.broadcast %185 : vector<8x1xf32> to vector<8x32xf32>
    %187 = arith.subf %181, %186 : vector<8x32xf32>
    %188 = arith.mulf %187, %187 : vector<8x32xf32>
    %cst_74 = arith.constant dense<0.000000e+00> : vector<8xf32>
    %189 = vector.multi_reduction <add>, %188, %cst_74 [1] : vector<8x32xf32> to vector<8xf32>
    %190 = vector.shape_cast %189 : vector<8xf32> to vector<8x1xf32>
    %cst_75 = arith.constant 3.200000e+01 : f32
    %191 = vector.broadcast %cst_75 : f32 to vector<8x1xf32>
    %192 = arith.divf %190, %191 : vector<8x1xf32>
    %193 = vector.broadcast %185 : vector<8x1xf32> to vector<8x32xf32>
    %194 = arith.subf %181, %193 : vector<8x32xf32>
    %cst_76 = arith.constant 9.99999974E-6 : f32
    %195 = vector.broadcast %cst_76 : f32 to vector<8x1xf32>
    %196 = arith.addf %192, %195 : vector<8x1xf32>
    %197 = math.rsqrt %196 : vector<8x1xf32>
    %198 = vector.broadcast %197 : vector<8x1xf32> to vector<8x32xf32>
    %199 = arith.mulf %194, %198 : vector<8x32xf32>
    %c0_77 = arith.constant 0 : index
    %c0_78 = arith.constant 0 : index
    %c0_79 = arith.constant 0 : index
    %200 = vector.load %arg7[%c0_77, %c0_78, %c0_79] : memref<1x8x32xf32, #tpu.memory_space<vmem>>, vector<1x8x32xf32>
    %201 = vector.shape_cast %200 : vector<1x8x32xf32> to vector<8x32xf32>
    %202 = vector.shape_cast %199 : vector<8x32xf32> to vector<1x8x32xf32>
    tpu.vector_store %arg7[%c0_77, %c0_78, %c0_79], %202 {strides = array<i32>} : memref<1x8x32xf32, #tpu.memory_space<vmem>>, vector<1x8x32xf32>,
    return
  }
  func.func @transform_0(%arg0: i32) -> (i32, i32, i32) {
    %c0_i32 = arith.constant 0 : i32
    %c0_i32_0 = arith.constant 0 : i32
    %c0_i32_1 = arith.constant 0 : i32
    return %arg0, %c0_i32, %c0_i32_0 : i32, i32, i32
  }
  func.func @transform_1(%arg0: i32) -> (i32, i32, i32) {
    %c0_i32 = arith.constant 0 : i32
    %c0_i32_0 = arith.constant 0 : i32
    %c0_i32_1 = arith.constant 0 : i32
    return %arg0, %c0_i32, %c0_i32_0 : i32, i32, i32
  }
  func.func @transform_2(%arg0: i32) -> (i32, i32, i32) {
    %c0_i32 = arith.constant 0 : i32
    %c0_i32_0 = arith.constant 0 : i32
    %c0_i32_1 = arith.constant 0 : i32
    %c0_i32_2 = arith.constant 0 : i32
    return %c0_i32, %c0_i32_0, %c0_i32_1 : i32, i32, i32
  }
  func.func @transform_3(%arg0: i32) -> (i32, i32, i32, i32) {
    %c0_i32 = arith.constant 0 : i32
    %c0_i32_0 = arith.constant 0 : i32
    %c0_i32_1 = arith.constant 0 : i32
    %c0_i32_2 = arith.constant 0 : i32
    %c0_i32_3 = arith.constant 0 : i32
    return %c0_i32, %c0_i32_0, %c0_i32_1, %c0_i32_2 : i32, i32, i32, i32
  }
  func.func @transform_4(%arg0: i32) -> (i32, i32, i32) {
    %c0_i32 = arith.constant 0 : i32
    %c0_i32_0 = arith.constant 0 : i32
    %c0_i32_1 = arith.constant 0 : i32
    %c0_i32_2 = arith.constant 0 : i32
    return %c0_i32, %c0_i32_0, %c0_i32_1 : i32, i32, i32
  }
  func.func @transform_5(%arg0: i32) -> (i32, i32, i32) {
    %c0_i32 = arith.constant 0 : i32
    %c0_i32_0 = arith.constant 0 : i32
    %c0_i32_1 = arith.constant 0 : i32
    %c0_i32_2 = arith.constant 0 : i32
    return %c0_i32, %c0_i32_0, %c0_i32_1 : i32, i32, i32
  }
  func.func @transform_6(%arg0: i32) -> (i32, i32, i32) {
    %c0_i32 = arith.constant 0 : i32
    %c0_i32_0 = arith.constant 0 : i32
    %c0_i32_1 = arith.constant 0 : i32
    return %arg0, %c0_i32, %c0_i32_0 : i32, i32, i32
  }
  func.func @transform_7(%arg0: i32) -> (i32, i32, i32, i32) {
    %c0_i32 = arith.constant 0 : i32
    %c0_i32_0 = arith.constant 0 : i32
    %c0_i32_1 = arith.constant 0 : i32
    %c0_i32_2 = arith.constant 0 : i32
    return %arg0, %c0_i32, %c0_i32_0, %c0_i32_1 : i32, i32, i32, i32
  }
  func.func @transform_8(%arg0: i32) -> (i32, i32, i32, i32) {
    %c0_i32 = arith.constant 0 : i32
    %c0_i32_0 = arith.constant 0 : i32
    %c0_i32_1 = arith.constant 0 : i32
    %c0_i32_2 = arith.constant 0 : i32
    return %arg0, %c0_i32, %c0_i32_0, %c0_i32_1 : i32, i32, i32, i32
  }
}

</mosaic_0001>

<llo_original>
// kernel: encoder_forward.1
$region0: #{encoder_forward.1}
  #allocation0 [shape = 'u32[]', space=smem, size = 0x4, offset = 0x4, fixed_abs, tag = 'smem constant byte address 0x4 - core index']
  #allocation1 [shape = 'u32[72,128]{1,0:T(1,128)}', space=vmem, size = 0x9000, scoped, tag = 'internal scratch']
  %s0 = inlined_call_operand.vmem [shape: f32[2,8,32], index: 0, kind: input, shape index: {}]
  %s1 = inlined_call_operand.vmem [shape: f32[2,8,8], index: 1, kind: input, shape index: {}]
  %s2 = inlined_call_operand.vmem [shape: f32[2,32,96], index: 2, kind: input, shape index: {}]
  %s3 = inlined_call_operand.vmem [shape: f32[2,4,8,32], index: 3, kind: input, shape index: {}]
  %s4 = inlined_call_operand.vmem [shape: f32[2,32,64], index: 4, kind: input, shape index: {}]
  %s5 = inlined_call_operand.vmem [shape: f32[2,64,32], index: 5, kind: input, shape index: {}]
  %s6 = inlined_call_operand.hbm [shape: f32[2,8,32], index: 6, kind: output, shape index: {0}]
  %s7 = inlined_call_operand.hbm [shape: f32[2,4,8,8], index: 7, kind: output, shape index: {1}]
  %s8 = inlined_call_operand.hbm [shape: f32[2,4,8,8], index: 8, kind: output, shape index: {2}]
  %9 = xla_tuple %s6, %s7, %s8
  %s10 = sld [smem:[#allocation0]]
  $region73: #{encoder_forward.1} parent=0
    _
  %s12 = ssub.s32 1, %s10
  %s13 = scalar_select 0, %s12, %s10
  $region1: #{encoder_forward.1} parent=0
    #allocation2 [shape = 'u8[8192]{0}', space=vmem, size = 0x2000, scoped, tag = 'output window, operand 0']
    #allocation3 [shape = 's32[2]{0}', space=sflag, size = 0x8, scoped, tag = 'scoped memory for encoder_forward.1']
    #allocation4 [shape = 'u8[32768]{0}', space=vmem, size = 0x8000, scoped, tag = 'output window, operand 1']
    #allocation5 [shape = 's32[2]{0}', space=sflag, size = 0x8, scoped, tag = 'scoped memory for encoder_forward.1']
    #allocation6 [shape = 'u8[32768]{0}', space=vmem, size = 0x8000, scoped, tag = 'output window, operand 2']
    %14 = vsyncpa [#allocation3], 0
    %s15 = scalar_lea.sflag [#allocation3], 1
    %16 = vsyncpa %s15, 0
    %17 = vsyncpa [#allocation5], 0
    %s18 = scalar_lea.sflag [#allocation5], 1
    %19 = vsyncpa %s18, 0
    loop: start=0, step=1, limit=4
    $region2: #{encoder_forward.1} parent=1 // loop_pre_header
      _
    $region3: #{encoder_forward.1} parent=1 // loop_header
      %s21 = sphi 0, %s25
      %p22 = scmp.ge.s32.totalorder %s21, 4
      %s31 = sphi 0, %s33
      %s34 = sphi 0, %s31
      %s35 = sphi 0, %s34
      %s51 = sphi 0, %s35
      %s57 = sphi 0, %s59
      %s60 = sphi 0, %s57
      %s61 = sphi 0, %s60
      %s77 = sphi 0, %s61
      %s81 = sphi 0, %s81
      %s83 = sphi 0, %s81
      %s84 = sphi 0, %s83
      %s98 = sphi 0, %s84
      %s102 = sphi 0, %s102
      %s104 = sphi 0, %s102
      %s105 = sphi 0, %s104
      %s119 = sphi 0, %s105
      %s123 = sphi 0, %s123
      %s125 = sphi 0, %s123
      %s126 = sphi 0, %s125
      %s140 = sphi 0, %s126
      %s144 = sphi 0, %s144
      %s146 = sphi 0, %s144
      %s147 = sphi 0, %s146
      %s161 = sphi 0, %s147
      %s167 = sphi 0, %s169
      %s170 = sphi 0, %s167
      %s171 = sphi 0, %s170
      %s187 = sphi 0, %s171
      %s193 = sphi 0, %s195
      %s196 = sphi 0, %s193
      %s197 = sphi 0, %s196
      %s213 = sphi 0, %s197
      %s219 = sphi 0, %s221
      %s222 = sphi 0, %s219
      %s223 = sphi 0, %s222
      %s239 = sphi 0, %s223
    $region4: #{encoder_forward.1} parent=1 // loop_header_branch
      %24 = sbr.rel (%p22) target = $region8
    $region5: #{encoder_forward.1} parent=1 // loop_body
      %s26 = ssub.s32 %s21, 1
      %s27 = ssub.s32 %s21, 2
      %s28 = sadd.s32 %s21, 1
      %s29 = ssub.s32 %s21, %s28
      %p30 = scmp.eq.s32.totalorder %s29, 0
      %s32 = sadd.s32 %s31, 1
      %s33 = scalar_select %p30, %s31, %s32
      %p36 = pneg %p30
      %p37 = scmp.eq.s32.totalorder %s21, 1
      %p38 = por %p36, %p37
      %p39 = scmp.ne.s32.totalorder %s31, %s34
      %p40 = scmp.eq.s32.totalorder %s21, 0
      %p41 = por %p39, %p40
      %p42 = scmp.ne.s32.totalorder %s31, %s34
      %p43 = scmp.eq.s32.totalorder %s26, 1
      %p44 = por %p42, %p43
      %p45 = scmp.ne.s32.totalorder %s34, %s35
      %p46 = scmp.eq.s32.totalorder %s26, 0
      %p47 = por %p45, %p46
      %p48 = scmp.ne.s32.totalorder %s34, %s35
      %p49 = scmp.eq.s32.totalorder %s27, 1
      %p50 = por %p48, %p49
      %p52 = scmp.ne.s32.totalorder %s35, %s51
      %p53 = scmp.eq.s32.totalorder %s27, 0
      %p54 = por %p52, %p53
      %s55 = ssub.s32 %s21, %s28
      %p56 = scmp.eq.s32.totalorder %s55, 0
      %s58 = sadd.s32 %s57, 1
      %s59 = scalar_select %p56, %s57, %s58
      %p62 = pneg %p56
      %p63 = scmp.eq.s32.totalorder %s21, 1
      %p64 = por %p62, %p63
      %p65 = scmp.ne.s32.totalorder %s57, %s60
      %p66 = scmp.eq.s32.totalorder %s21, 0
      %p67 = por %p65, %p66
      %p68 = scmp.ne.s32.totalorder %s57, %s60
      %p69 = scmp.eq.s32.totalorder %s26, 1
      %p70 = por %p68, %p69
      %p71 = scmp.ne.s32.totalorder %s60, %s61
      %p72 = scmp.eq.s32.totalorder %s26, 0
      %p73 = por %p71, %p72
      %p74 = scmp.ne.s32.totalorder %s60, %s61
      %p75 = scmp.eq.s32.totalorder %s27, 1
      %p76 = por %p74, %p75
      %p78 = scmp.ne.s32.totalorder %s61, %s77
      %p79 = scmp.eq.s32.totalorder %s27, 0
      %p80 = por %p78, %p79
      %s82 = sadd.s32 %s81, 1
      %p85 = scmp.eq.s32.totalorder %s21, 1
      %p86 = scmp.ne.s32.totalorder %s81, %s83
      %p87 = scmp.eq.s32.totalorder %s21, 0
      %p88 = por %p86, %p87
      %p89 = scmp.ne.s32.totalorder %s81, %s83
      %p90 = scmp.eq.s32.totalorder %s26, 1
      %p91 = por %p89, %p90
      %p92 = scmp.ne.s32.totalorder %s83, %s84
      %p93 = scmp.eq.s32.totalorder %s26, 0
      %p94 = por %p92, %p93
      %p95 = scmp.ne.s32.totalorder %s83, %s84
      %p96 = scmp.eq.s32.totalorder %s27, 1
      %p97 = por %p95, %p96
      %p99 = scmp.ne.s32.totalorder %s84, %s98
      %p100 = scmp.eq.s32.totalorder %s27, 0
      %p101 = por %p99, %p100
      %s103 = sadd.s32 %s102, 1
      %p106 = scmp.eq.s32.totalorder %s21, 1
      %p107 = scmp.ne.s32.totalorder %s102, %s104
      %p108 = scmp.eq.s32.totalorder %s21, 0
      %p109 = por %p107, %p108
      %p110 = scmp.ne.s32.totalorder %s102, %s104
      %p111 = scmp.eq.s32.totalorder %s26, 1
      %p112 = por %p110, %p111
      %p113 = scmp.ne.s32.totalorder %s104, %s105
      %p114 = scmp.eq.s32.totalorder %s26, 0
      %p115 = por %p113, %p114
      %p116 = scmp.ne.s32.totalorder %s104, %s105
      %p117 = scmp.eq.s32.totalorder %s27, 1
      %p118 = por %p116, %p117
      %p120 = scmp.ne.s32.totalorder %s105, %s119
      %p121 = scmp.eq.s32.totalorder %s27, 0
      %p122 = por %p120, %p121
      %s124 = sadd.s32 %s123, 1
      %p127 = scmp.eq.s32.totalorder %s21, 1
      %p128 = scmp.ne.s32.totalorder %s123, %s125
      %p129 = scmp.eq.s32.totalorder %s21, 0
      %p130 = por %p128, %p129
      %p131 = scmp.ne.s32.totalorder %s123, %s125
      %p132 = scmp.eq.s32.totalorder %s26, 1
      %p133 = por %p131, %p132
      %p134 = scmp.ne.s32.totalorder %s125, %s126
      %p135 = scmp.eq.s32.totalorder %s26, 0
      %p136 = por %p134, %p135
      %p137 = scmp.ne.s32.totalorder %s125, %s126
      %p138 = scmp.eq.s32.totalorder %s27, 1
      %p139 = por %p137, %p138
      %p141 = scmp.ne.s32.totalorder %s126, %s140
      %p142 = scmp.eq.s32.totalorder %s27, 0
      %p143 = por %p141, %p142
      %s145 = sadd.s32 %s144, 1
      %p148 = scmp.eq.s32.totalorder %s21, 1
      %p149 = scmp.ne.s32.totalorder %s144, %s146
      %p150 = scmp.eq.s32.totalorder %s21, 0
      %p151 = por %p149, %p150
      %p152 = scmp.ne.s32.totalorder %s144, %s146
      %p153 = scmp.eq.s32.totalorder %s26, 1
      %p154 = por %p152, %p153
      %p155 = scmp.ne.s32.totalorder %s146, %s147
      %p156 = scmp.eq.s32.totalorder %s26, 0
      %p157 = por %p155, %p156
      %p158 = scmp.ne.s32.totalorder %s146, %s147
      %p159 = scmp.eq.s32.totalorder %s27, 1
      %p160 = por %p158, %p159
      %p162 = scmp.ne.s32.totalorder %s147, %s161
      %p163 = scmp.eq.s32.totalorder %s27, 0
      %p164 = por %p162, %p163
      %s165 = ssub.s32 %s21, %s28
      %p166 = scmp.eq.s32.totalorder %s165, 0
      %s168 = sadd.s32 %s167, 1
      %s169 = scalar_select %p166, %s167, %s168
      %p172 = pneg %p166
      %p173 = scmp.eq.s32.totalorder %s21, 1
      %p174 = por %p172, %p173
      %p175 = scmp.ne.s32.totalorder %s167, %s170
      %p176 = scmp.eq.s32.totalorder %s21, 0
      %p177 = por %p175, %p176
      %p178 = scmp.ne.s32.totalorder %s167, %s170
      %p179 = scmp.eq.s32.totalorder %s26, 1
      %p180 = por %p178, %p179
      %p181 = scmp.ne.s32.totalorder %s170, %s171
      %p182 = scmp.eq.s32.totalorder %s26, 0
      %p183 = por %p181, %p182
      %p184 = scmp.ne.s32.totalorder %s170, %s171
      %p185 = scmp.eq.s32.totalorder %s27, 1
      %p186 = por %p184, %p185
      %p188 = scmp.ne.s32.totalorder %s171, %s187
      %p189 = scmp.eq.s32.totalorder %s27, 0
      %p190 = por %p188, %p189
      %s191 = ssub.s32 %s21, %s28
      %p192 = scmp.eq.s32.totalorder %s191, 0
      %s194 = sadd.s32 %s193, 1
      %s195 = scalar_select %p192, %s193, %s194
      %p198 = pneg %p192
      %p199 = scmp.eq.s32.totalorder %s21, 1
      %p200 = por %p198, %p199
      %p201 = scmp.ne.s32.totalorder %s193, %s196
      %p202 = scmp.eq.s32.totalorder %s21, 0
      %p203 = por %p201, %p202
      %p204 = scmp.ne.s32.totalorder %s193, %s196
      %p205 = scmp.eq.s32.totalorder %s26, 1
      %p206 = por %p204, %p205
      %p207 = scmp.ne.s32.totalorder %s196, %s197
      %p208 = scmp.eq.s32.totalorder %s26, 0
      %p209 = por %p207, %p208
      %p210 = scmp.ne.s32.totalorder %s196, %s197
      %p211 = scmp.eq.s32.totalorder %s27, 1
      %p212 = por %p210, %p211
      %p214 = scmp.ne.s32.totalorder %s197, %s213
      %p215 = scmp.eq.s32.totalorder %s27, 0
      %p216 = por %p214, %p215
      %s217 = ssub.s32 %s21, %s28
      %p218 = scmp.eq.s32.totalorder %s217, 0
      %s220 = sadd.s32 %s219, 1
      %s221 = scalar_select %p218, %s219, %s220
      %p224 = pneg %p218
      %p225 = scmp.eq.s32.totalorder %s21, 1
      %p226 = por %p224, %p225
      %p227 = scmp.ne.s32.totalorder %s219, %s222
      %p228 = scmp.eq.s32.totalorder %s21, 0
      %p229 = por %p227, %p228
      %p230 = scmp.ne.s32.totalorder %s219, %s222
      %p231 = scmp.eq.s32.totalorder %s26, 1
      %p232 = por %p230, %p231
      %p233 = scmp.ne.s32.totalorder %s222, %s223
      %p234 = scmp.eq.s32.totalorder %s26, 0
      %p235 = por %p233, %p234
      %p236 = scmp.ne.s32.totalorder %s222, %s223
      %p237 = scmp.eq.s32.totalorder %s27, 1
      %p238 = por %p236, %p237
      %p240 = scmp.ne.s32.totalorder %s223, %s239
      %p241 = scmp.eq.s32.totalorder %s27, 0
      %p242 = por %p240, %p241
      %p243 = scmp.le.s32.totalorder 1, %s21
      %p244 = scmp.lt.s32.totalorder %s21, 3
      %p245 = pnand %p243, %p244
      %p246 = pneg %p245
      // Predicated region
      $region9: #{encoder_forward.1} parent=5 // pred_check
        _
      $region10: #{encoder_forward.1} parent=5 // pred_check_branch
        %248 = sbr.rel (%p245) target = $region12
      $region11: #{encoder_forward.1} parent=5 // pred_region
        %s249 = ssub.s32 %s21, 1
        // Predicated region
        $region13: #{encoder_forward.1} parent=11 // pred_check
          %p250 = pneg %p94
        $region14: #{encoder_forward.1} parent=11 // pred_check_branch
          %252 = sbr.rel (%p250) target = $region16
        $region15: #{encoder_forward.1} parent=11 // pred_region
          _
        $region16: #{encoder_forward.1} parent=11 // pred_fallthru
          _
        // Predicated region
        $region17: #{encoder_forward.1} parent=11 // pred_check
          %p253 = pneg %p115
        $region18: #{encoder_forward.1} parent=11 // pred_check_branch
          %255 = sbr.rel (%p253) target = $region20
        $region19: #{encoder_forward.1} parent=11 // pred_region
          _
        $region20: #{encoder_forward.1} parent=11 // pred_fallthru
          _
        // Predicated region
        $region21: #{encoder_forward.1} parent=11 // pred_check
          %p256 = pneg %p136
        $region22: #{encoder_forward.1} parent=11 // pred_check_branch
          %258 = sbr.rel (%p256) target = $region24
        $region23: #{encoder_forward.1} parent=11 // pred_region
          _
        $region24: #{encoder_forward.1} parent=11 // pred_fallthru
          _
        // Predicated region
        $region25: #{encoder_forward.1} parent=11 // pred_check
          %p259 = pneg %p157
        $region26: #{encoder_forward.1} parent=11 // pred_check_branch
          %261 = sbr.rel (%p259) target = $region28
        $region27: #{encoder_forward.1} parent=11 // pred_region
          _
        $region28: #{encoder_forward.1} parent=11 // pred_fallthru
          _
      $region12: #{encoder_forward.1} parent=5 // pred_fallthru
        _
      %p262 = scmp.lt.s32.totalorder %s21, 2
      // Predicated region
      $region29: #{encoder_forward.1} parent=5 // pred_check
        %p263 = pneg %p262
      $region30: #{encoder_forward.1} parent=5 // pred_check_branch
        %265 = sbr.rel (%p263) target = $region32
      $region31: #{encoder_forward.1} parent=5 // pred_region
        // Predicated region
        $region33: #{encoder_forward.1} parent=31 // pred_check
          %p266 = pneg %p41
        $region34: #{encoder_forward.1} parent=31 // pred_check_branch
          %268 = sbr.rel (%p266) target = $region36
        $region35: #{encoder_forward.1} parent=31 // pred_region
          %p269 = scmp.lt.s32.totalorder %s21, 1
          %s270 = scalar_select %p269, %s21, 1
          %s271 = smul.addr %s270, 8
          %s272 = scalar_lea.vmem %s0, %s271
        $region36: #{encoder_forward.1} parent=31 // pred_fallthru
          _
        // Predicated region
        $region37: #{encoder_forward.1} parent=31 // pred_check
          %p273 = pneg %p67
        $region38: #{encoder_forward.1} parent=31 // pred_check_branch
          %275 = sbr.rel (%p273) target = $region40
        $region39: #{encoder_forward.1} parent=31 // pred_region
          %p276 = scmp.lt.s32.totalorder %s21, 1
          %s277 = scalar_select %p276, %s21, 1
          %s278 = smul.addr %s277, 8
          %s279 = scalar_lea.vmem %s1, %s278
        $region40: #{encoder_forward.1} parent=31 // pred_fallthru
          _
      $region32: #{encoder_forward.1} parent=5 // pred_fallthru
        _
      %p280 = scmp.le.s32.totalorder 1, %s21
      %p281 = scmp.lt.s32.totalorder %s21, 3
      %p282 = pnand %p280, %p281
      %p283 = pneg %p282
      // Predicated region
      $region41: #{encoder_forward.1} parent=5 // pred_check
        _
      $region42: #{encoder_forward.1} parent=5 // pred_check_branch
        %285 = sbr.rel (%p282) target = $region44
      $region43: #{encoder_forward.1} parent=5 // pred_region
        %s286 = ssub.s32 %s21, 1
        %p287 = scmp.lt.s32.totalorder %s26, 1
        %s288 = scalar_select %p287, %s26, 1
        %s289 = smul.addr %s288, 8
        %s290 = scalar_lea.vmem %s0, %s289
        %p291 = pneg %p47
        %p292 = pneg %p44
        %p293 = scmp.lt.s32.totalorder %s26, 1
        %s294 = scalar_select %p293, %s26, 1
        %s295 = smul.addr %s294, 8
        %s296 = scalar_lea.vmem %s1, %s295
        %p297 = pneg %p73
        %p298 = pneg %p70
        %p299 = pneg %p94
        %p300 = pneg %p91
        %p301 = pneg %p115
        %p302 = pneg %p112
        %p303 = pneg %p136
        %p304 = pneg %p133
        %p305 = pneg %p157
        %p306 = pneg %p154
        %p307 = pneg %p183
        %p308 = pneg %p180
        %s309 = sand.u32 %s170, 1
        %s310 = scalar_lea.sflag [#allocation3], %s309
        %s311 = sand.u32 %s170, 1
        %s312 = smul.addr %s311, 8
        %s313 = scalar_lea.vmem [#allocation2], %s312
        %p314 = pneg %p209
        %p315 = pneg %p206
        %s316 = sand.u32 %s26, 1
        %s317 = scalar_lea.sflag [#allocation5], %s316
        %s318 = sand.u32 %s196, 1
        %s319 = smul.addr %s318, 32
        %s320 = scalar_lea.vmem [#allocation4], %s319
        %p321 = pneg %p235
        %p322 = pneg %p232
        %s323 = sand.u32 %s26, 1
        %s324 = scalar_lea.sflag [#allocation5], %s323
        %s325 = sand.u32 %s222, 1
        %s326 = smul.addr %s325, 32
        %s327 = scalar_lea.vmem [#allocation6], %s326
        %p328 = scmp.lt.s32.totalorder %s26, 1
        %s329 = scalar_select %p328, %s26, 1
        %s330 = smul.addr %s329, 8
        %s331 = scalar_lea.vmem %s0, %s330
        %p332 = scmp.lt.s32.totalorder %s26, 1
        %s333 = scalar_select %p332, %s26, 1
        %s334 = smul.addr %s333, 8
        %s335 = scalar_lea.vmem %s1, %s334
        %v336 = vld [vmem:[%s331] sm:$0xff]
        %v337 = vld [vmem:[%s335] sm:$0xff]
        %v338 = vld [vmem:[%s2] sm:$0xff]
        %v339 = vld [vmem:[%s2 + $0x8] sm:$0xff]
        %v340 = vld [vmem:[%s2 + $0x10] sm:$0xff]
        %v341 = vld [vmem:[%s2 + $0x18] sm:$0xff]
        %vm342 = vcmask 261120
        %v344 = vsel %vm342, %v336, 0
        %346 = vmatpush.msra.mxu0 0.0
        %347 = vmatpush.msra.mxu0 0.0
        %348 = vmatpush.msra.mxu0 0.0
        %349 = vmatpush.msra.mxu0 0.0
        %350 = vmatpush.msra.mxu0 0.0
        %351 = vmatpush.msra.mxu0 0.0
        %352 = vmatpush.msra.mxu0 0.0
        %353 = vmatpush.msra.mxu0 0.0
        %354 = vmatpush.msra.mxu0 0.0
        %355 = vmatpush.msra.mxu0 0.0
        %356 = vmatpush.msra.mxu0 0.0
        %357 = vmatpush.msra.mxu0 0.0
        %358 = vmatpush.msra.mxu0 %v341
        %359 = vmatpush.msra.mxu0 %v340
        %360 = vmatpush.msra.mxu0 %v339
        %361 = vmatpush.msra.mxu0 %v338
        %362 = vmatmul.f32.gmra.mxu0 %v344
        %v363 = vpop.f32.mrf.mxu0
        %v364 = vadd.f32 0.0, %v363
        %365 = vdwg.mxu0
        %367 = vrot.lane.b32.xlu0 %v364, 120
        %v368 = vpop.permute.xlu0 %367
        %369 = vrot.lane.b32.xlu0 %v364, 112
        %v370 = vpop.permute.xlu0 %369
        %371 = vrot.lane.b32.xlu0 %v364, 104
        %v372 = vpop.permute.xlu0 %371
        %373 = vrot.lane.b32.xlu0 %v364, 96
        %v374 = vpop.permute.xlu0 %373
        %vm375 = vcmask 64512
        %v376 = vsel %vm375, %v364, 0
        %v378 = vsel %vm375, %v374, 0
        %380 = vmatpush.xpose.msra.mxu0 0.0
        %381 = vmatpush.xpose.msra.mxu0 0.0
        %382 = vmatpush.xpose.msra.mxu0 0.0
        %383 = vmatpush.xpose.msra.mxu0 0.0
        %384 = vmatpush.xpose.msra.mxu0 0.0
        %385 = vmatpush.xpose.msra.mxu0 0.0
        %386 = vmatpush.xpose.msra.mxu0 0.0
        %387 = vmatpush.xpose.msra.mxu0 0.0
        %388 = vmatpush.xpose.msra.mxu0 0.0
        %389 = vmatpush.xpose.msra.mxu0 0.0
        %390 = vmatpush.xpose.msra.mxu0 0.0
        %391 = vmatpush.xpose.msra.mxu0 0.0
        %392 = vmatpush.xpose.msra.mxu0 0.0
        %393 = vmatpush.xpose.msra.mxu0 0.0
        %394 = vmatpush.xpose.msra.mxu0 0.0
        %395 = vmatpush.xpose.msra.mxu0 %v378
        %396 = vmatmul.f32.gmra.mxu0 %v376
        %v397 = vpop.f32.mrf.mxu0
        %v398 = vadd.f32 %v337, %v397
        %399 = vdwg.mxu0
        %400 = vrot.lane.b32.xlu0 %v368, 96
        %v401 = vpop.permute.xlu0 %400
        %v402 = vsel %vm375, %v368, 0
        %v404 = vsel %vm375, %v401, 0
        %406 = vmatpush.xpose.msra.mxu0 0.0
        %407 = vmatpush.xpose.msra.mxu0 0.0
        %408 = vmatpush.xpose.msra.mxu0 0.0
        %409 = vmatpush.xpose.msra.mxu0 0.0
        %410 = vmatpush.xpose.msra.mxu0 0.0
        %411 = vmatpush.xpose.msra.mxu0 0.0
        %412 = vmatpush.xpose.msra.mxu0 0.0
        %413 = vmatpush.xpose.msra.mxu0 0.0
        %414 = vmatpush.xpose.msra.mxu0 0.0
        %415 = vmatpush.xpose.msra.mxu0 0.0
        %416 = vmatpush.xpose.msra.mxu0 0.0
        %417 = vmatpush.xpose.msra.mxu0 0.0
        %418 = vmatpush.xpose.msra.mxu0 0.0
        %419 = vmatpush.xpose.msra.mxu0 0.0
        %420 = vmatpush.xpose.msra.mxu0 0.0
        %421 = vmatpush.xpose.msra.mxu0 %v404
        %422 = vmatmul.f32.gmra.mxu0 %v402
        %v423 = vpop.f32.mrf.mxu0
        %v424 = vadd.f32 %v337, %v423
        %425 = vdwg.mxu0
        %426 = vrot.lane.b32.xlu0 %v370, 96
        %v427 = vpop.permute.xlu0 %426
        %v428 = vsel %vm375, %v370, 0
        %v430 = vsel %vm375, %v427, 0
        %432 = vmatpush.xpose.msra.mxu0 0.0
        %433 = vmatpush.xpose.msra.mxu0 0.0
        %434 = vmatpush.xpose.msra.mxu0 0.0
        %435 = vmatpush.xpose.msra.mxu0 0.0
        %436 = vmatpush.xpose.msra.mxu0 0.0
        %437 = vmatpush.xpose.msra.mxu0 0.0
        %438 = vmatpush.xpose.msra.mxu0 0.0
        %439 = vmatpush.xpose.msra.mxu0 0.0
        %440 = vmatpush.xpose.msra.mxu0 0.0
        %441 = vmatpush.xpose.msra.mxu0 0.0
        %442 = vmatpush.xpose.msra.mxu0 0.0
        %443 = vmatpush.xpose.msra.mxu0 0.0
        %444 = vmatpush.xpose.msra.mxu0 0.0
        %445 = vmatpush.xpose.msra.mxu0 0.0
        %446 = vmatpush.xpose.msra.mxu0 0.0
        %447 = vmatpush.xpose.msra.mxu0 %v430
        %448 = vmatmul.f32.gmra.mxu0 %v428
        %v449 = vpop.f32.mrf.mxu0
        %v450 = vadd.f32 %v337, %v449
        %451 = vdwg.mxu0
        %452 = vrot.lane.b32.xlu0 %v372, 96
        %v453 = vpop.permute.xlu0 %452
        %v454 = vsel %vm375, %v372, 0
        %v456 = vsel %vm375, %v453, 0
        %458 = vmatpush.xpose.msra.mxu0 0.0
        %459 = vmatpush.xpose.msra.mxu0 0.0
        %460 = vmatpush.xpose.msra.mxu0 0.0
        %461 = vmatpush.xpose.msra.mxu0 0.0
        %462 = vmatpush.xpose.msra.mxu0 0.0
        %463 = vmatpush.xpose.msra.mxu0 0.0
        %464 = vmatpush.xpose.msra.mxu0 0.0
        %465 = vmatpush.xpose.msra.mxu0 0.0
        %466 = vmatpush.xpose.msra.mxu0 0.0
        %467 = vmatpush.xpose.msra.mxu0 0.0
        %468 = vmatpush.xpose.msra.mxu0 0.0
        %469 = vmatpush.xpose.msra.mxu0 0.0
        %470 = vmatpush.xpose.msra.mxu0 0.0
        %471 = vmatpush.xpose.msra.mxu0 0.0
        %472 = vmatpush.xpose.msra.mxu0 0.0
        %473 = vmatpush.xpose.msra.mxu0 %v456
        %474 = vmatmul.f32.gmra.mxu0 %v454
        %v475 = vpop.f32.mrf.mxu0
        %v476 = vadd.f32 %v337, %v475
        %477 = vdwg.mxu0
        %v478 = vsel %vm375, %v398, -inf
        %479 = vmax.xlane.f32.xlu0 %v478
        %v480 = vpop.xlane.xlu0 %479
        %v481 = vsel %vm375, %v424, -inf
        %482 = vmax.xlane.f32.xlu0 %v481
        %v483 = vpop.xlane.xlu0 %482
        %v484 = vsel %vm375, %v450, -inf
        %485 = vmax.xlane.f32.xlu0 %v484
        %v486 = vpop.xlane.xlu0 %485
        %v487 = vsel %vm375, %v476, -inf
        %488 = vmax.xlane.f32.xlu0 %v487
        %v489 = vpop.xlane.xlu0 %488
        %v490 = vsub.f32 %v398, %v480
        %v491 = vsub.f32 %v424, %v483
        %v492 = vsub.f32 %v450, %v486
        %v493 = vsub.f32 %v476, %v489
        %v494 = vmul.f32 %v490, 1.442695
        %v495 = vpow.pop %v494
        %v496 = vmul.f32 %v491, 1.442695
        %v497 = vpow.pop %v496
        %v498 = vmul.f32 %v492, 1.442695
        %v499 = vpow.pop %v498
        %v500 = vmul.f32 %v493, 1.442695
        %v501 = vpow.pop %v500
        %v502 = vsel %vm375, %v495, 0.0
        %503 = vadd.xlane.f32.xlu0 %v502
        %v504 = vpop.xlane.xlu0 %503
        %v505 = vsel %vm375, %v497, 0.0
        %506 = vadd.xlane.f32.xlu0 %v505
        %v507 = vpop.xlane.xlu0 %506
        %v508 = vsel %vm375, %v499, 0.0
        %509 = vadd.xlane.f32.xlu0 %v508
        %v510 = vpop.xlane.xlu0 %509
        %v511 = vsel %vm375, %v501, 0.0
        %512 = vadd.xlane.f32.xlu0 %v511
        %v513 = vpop.xlane.xlu0 %512
        %v514 = vrcp.pop %v504
        %v515 = vrcp.pop %v507
        %v516 = vrcp.pop %v510
        %v517 = vrcp.pop %v513
        %v518 = vmul.f32 %v495, %v514
        %v519 = vmul.f32 %v497, %v515
        %v520 = vmul.f32 %v499, %v516
        %v521 = vmul.f32 %v501, %v517
        %522 = vst.msk [vmem:[%s320] sm:$0xff] %vm375, %v518
        %523 = vst.msk [vmem:[%s320 + $0x8] sm:$0xff] %vm375, %v519
        %524 = vst.msk [vmem:[%s320 + $0x10] sm:$0xff] %vm375, %v520
        %525 = vst.msk [vmem:[%s320 + $0x18] sm:$0xff] %vm375, %v521
        %526 = vrot.lane.b32.xlu0 %v364, 64
        %v527 = vpop.permute.xlu0 %526
        %v530 = vsel %vm375, %v518, 0
        %532 = vmatpush.msra.mxu0 0.0
        %533 = vmatpush.msra.mxu0 0.0
        %534 = vmatpush.msra.mxu0 0.0
        %535 = vmatpush.msra.mxu0 0.0
        %536 = vmatpush.msra.mxu0 0.0
        %537 = vmatpush.msra.mxu0 0.0
        %538 = vmatpush.msra.mxu0 0.0
        %539 = vmatpush.msra.mxu0 0.0
        %540 = vmatpush.msra.mxu0 0.0
        %541 = vmatpush.msra.mxu0 0.0
        %542 = vmatpush.msra.mxu0 0.0
        %543 = vmatpush.msra.mxu0 0.0
        %544 = vmatpush.msra.mxu0 0.0
        %545 = vmatpush.msra.mxu0 0.0
        %546 = vmatpush.msra.mxu0 0.0
        %547 = vmatpush.msra.mxu0 %v527
        %548 = vmatmul.f32.gmra.mxu0 %v530
        %v549 = vpop.f32.mrf.mxu0
        %v550 = vadd.f32 0.0, %v549
        %551 = vdwg.mxu0
        %552 = vrot.lane.b32.xlu0 %v368, 64
        %v553 = vpop.permute.xlu0 %552
        %v556 = vsel %vm375, %v519, 0
        %558 = vmatpush.msra.mxu0 0.0
        %559 = vmatpush.msra.mxu0 0.0
        %560 = vmatpush.msra.mxu0 0.0
        %561 = vmatpush.msra.mxu0 0.0
        %562 = vmatpush.msra.mxu0 0.0
        %563 = vmatpush.msra.mxu0 0.0
        %564 = vmatpush.msra.mxu0 0.0
        %565 = vmatpush.msra.mxu0 0.0
        %566 = vmatpush.msra.mxu0 0.0
        %567 = vmatpush.msra.mxu0 0.0
        %568 = vmatpush.msra.mxu0 0.0
        %569 = vmatpush.msra.mxu0 0.0
        %570 = vmatpush.msra.mxu0 0.0
        %571 = vmatpush.msra.mxu0 0.0
        %572 = vmatpush.msra.mxu0 0.0
        %573 = vmatpush.msra.mxu0 %v553
        %574 = vmatmul.f32.gmra.mxu0 %v556
        %v575 = vpop.f32.mrf.mxu0
        %v576 = vadd.f32 0.0, %v575
        %577 = vdwg.mxu0
        %578 = vrot.lane.b32.xlu0 %v370, 64
        %v579 = vpop.permute.xlu0 %578
        %v582 = vsel %vm375, %v520, 0
        %584 = vmatpush.msra.mxu0 0.0
        %585 = vmatpush.msra.mxu0 0.0
        %586 = vmatpush.msra.mxu0 0.0
        %587 = vmatpush.msra.mxu0 0.0
        %588 = vmatpush.msra.mxu0 0.0
        %589 = vmatpush.msra.mxu0 0.0
        %590 = vmatpush.msra.mxu0 0.0
        %591 = vmatpush.msra.mxu0 0.0
        %592 = vmatpush.msra.mxu0 0.0
        %593 = vmatpush.msra.mxu0 0.0
        %594 = vmatpush.msra.mxu0 0.0
        %595 = vmatpush.msra.mxu0 0.0
        %596 = vmatpush.msra.mxu0 0.0
        %597 = vmatpush.msra.mxu0 0.0
        %598 = vmatpush.msra.mxu0 0.0
        %599 = vmatpush.msra.mxu0 %v579
        %600 = vmatmul.f32.gmra.mxu0 %v582
        %v601 = vpop.f32.mrf.mxu0
        %v602 = vadd.f32 0.0, %v601
        %603 = vdwg.mxu0
        %604 = vrot.lane.b32.xlu0 %v372, 64
        %v605 = vpop.permute.xlu0 %604
        %v608 = vsel %vm375, %v521, 0
        %610 = vmatpush.msra.mxu0 0.0
        %611 = vmatpush.msra.mxu0 0.0
        %612 = vmatpush.msra.mxu0 0.0
        %613 = vmatpush.msra.mxu0 0.0
        %614 = vmatpush.msra.mxu0 0.0
        %615 = vmatpush.msra.mxu0 0.0
        %616 = vmatpush.msra.mxu0 0.0
        %617 = vmatpush.msra.mxu0 0.0
        %618 = vmatpush.msra.mxu0 0.0
        %619 = vmatpush.msra.mxu0 0.0
        %620 = vmatpush.msra.mxu0 0.0
        %621 = vmatpush.msra.mxu0 0.0
        %622 = vmatpush.msra.mxu0 0.0
        %623 = vmatpush.msra.mxu0 0.0
        %624 = vmatpush.msra.mxu0 0.0
        %625 = vmatpush.msra.mxu0 %v605
        %626 = vmatmul.f32.gmra.mxu0 %v608
        %v627 = vpop.f32.mrf.mxu0
        %v628 = vadd.f32 0.0, %v627
        %629 = vdwg.mxu0
        %v630 = vld [vmem:[%s3] sm:$0xff]
        %v631 = vld [vmem:[%s3 + $0x8] sm:$0xff]
        %v632 = vld [vmem:[%s3 + $0x10] sm:$0xff]
        %v633 = vld [vmem:[%s3 + $0x18] sm:$0xff]
        %v635 = vsel %vm375, %v550, 0
        %637 = vmatpush.msra.mxu0 0.0
        %638 = vmatpush.msra.mxu0 0.0
        %639 = vmatpush.msra.mxu0 0.0
        %640 = vmatpush.msra.mxu0 0.0
        %641 = vmatpush.msra.mxu0 0.0
        %642 = vmatpush.msra.mxu0 0.0
        %643 = vmatpush.msra.mxu0 0.0
        %644 = vmatpush.msra.mxu0 0.0
        %645 = vmatpush.msra.mxu0 0.0
        %646 = vmatpush.msra.mxu0 0.0
        %647 = vmatpush.msra.mxu0 0.0
        %648 = vmatpush.msra.mxu0 0.0
        %649 = vmatpush.msra.mxu0 0.0
        %650 = vmatpush.msra.mxu0 0.0
        %651 = vmatpush.msra.mxu0 0.0
        %652 = vmatpush.msra.mxu0 %v630
        %653 = vmatmul.f32.gmra.mxu0 %v635
        %v654 = vpop.f32.mrf.mxu0
        %v655 = vadd.f32 0.0, %v654
        %656 = vdwg.mxu0
        %v658 = vsel %vm375, %v576, 0
        %660 = vmatpush.msra.mxu0 0.0
        %661 = vmatpush.msra.mxu0 0.0
        %662 = vmatpush.msra.mxu0 0.0
        %663 = vmatpush.msra.mxu0 0.0
        %664 = vmatpush.msra.mxu0 0.0
        %665 = vmatpush.msra.mxu0 0.0
        %666 = vmatpush.msra.mxu0 0.0
        %667 = vmatpush.msra.mxu0 0.0
        %668 = vmatpush.msra.mxu0 0.0
        %669 = vmatpush.msra.mxu0 0.0
        %670 = vmatpush.msra.mxu0 0.0
        %671 = vmatpush.msra.mxu0 0.0
        %672 = vmatpush.msra.mxu0 0.0
        %673 = vmatpush.msra.mxu0 0.0
        %674 = vmatpush.msra.mxu0 0.0
        %675 = vmatpush.msra.mxu0 %v631
        %676 = vmatmul.f32.gmra.mxu0 %v658
        %v677 = vpop.f32.mrf.mxu0
        %v678 = vadd.f32 0.0, %v677
        %679 = vdwg.mxu0
        %v681 = vsel %vm375, %v602, 0
        %683 = vmatpush.msra.mxu0 0.0
        %684 = vmatpush.msra.mxu0 0.0
        %685 = vmatpush.msra.mxu0 0.0
        %686 = vmatpush.msra.mxu0 0.0
        %687 = vmatpush.msra.mxu0 0.0
        %688 = vmatpush.msra.mxu0 0.0
        %689 = vmatpush.msra.mxu0 0.0
        %690 = vmatpush.msra.mxu0 0.0
        %691 = vmatpush.msra.mxu0 0.0
        %692 = vmatpush.msra.mxu0 0.0
        %693 = vmatpush.msra.mxu0 0.0
        %694 = vmatpush.msra.mxu0 0.0
        %695 = vmatpush.msra.mxu0 0.0
        %696 = vmatpush.msra.mxu0 0.0
        %697 = vmatpush.msra.mxu0 0.0
        %698 = vmatpush.msra.mxu0 %v632
        %699 = vmatmul.f32.gmra.mxu0 %v681
        %v700 = vpop.f32.mrf.mxu0
        %v701 = vadd.f32 0.0, %v700
        %702 = vdwg.mxu0
        %v704 = vsel %vm375, %v628, 0
        %706 = vmatpush.msra.mxu0 0.0
        %707 = vmatpush.msra.mxu0 0.0
        %708 = vmatpush.msra.mxu0 0.0
        %709 = vmatpush.msra.mxu0 0.0
        %710 = vmatpush.msra.mxu0 0.0
        %711 = vmatpush.msra.mxu0 0.0
        %712 = vmatpush.msra.mxu0 0.0
        %713 = vmatpush.msra.mxu0 0.0
        %714 = vmatpush.msra.mxu0 0.0
        %715 = vmatpush.msra.mxu0 0.0
        %716 = vmatpush.msra.mxu0 0.0
        %717 = vmatpush.msra.mxu0 0.0
        %718 = vmatpush.msra.mxu0 0.0
        %719 = vmatpush.msra.mxu0 0.0
        %720 = vmatpush.msra.mxu0 0.0
        %721 = vmatpush.msra.mxu0 %v633
        %722 = vmatmul.f32.gmra.mxu0 %v704
        %v723 = vpop.f32.mrf.mxu0
        %v724 = vadd.f32 0.0, %v723
        %725 = vdwg.mxu0
        %v726 = vsel %vm342, %v655, 0.0
        %v727 = vsel %vm342, %v678, 0.0
        %v728 = vadd.f32 %v726, %v727
        %v729 = vsel %vm342, %v701, 0.0
        %v730 = vadd.f32 %v728, %v729
        %v731 = vsel %vm342, %v724, 0.0
        %v732 = vadd.f32 %v730, %v731
        %v733 = vadd.f32 %v732, %v336
        %v734 = vsel %vm342, %v733, 0.0
        %735 = vadd.xlane.f32.xlu0 %v734
        %v736 = vpop.xlane.xlu0 %735
        %v737 = vrcp.pop 32.0
        %v738 = vmul.f32 32.0, %v737
        %v739 = vsub.f32 1.0, %v738
        %v740 = vmul.f32 %v737, %v739
        %v741 = vadd.f32 %v737, %v740
        %vm742 = vweird.f32 %v737
        %v743 = vsel %vm742, %v737, %v741
        %v744 = vmul.f32 %v736, %v743
        %v745 = vsub.f32 %v733, %v744
        %v746 = vmul.f32 %v745, %v745
        %v747 = vsel %vm342, %v746, 0.0
        %748 = vadd.xlane.f32.xlu0 %v747
        %v749 = vpop.xlane.xlu0 %748
        %v750 = vmul.f32 %v749, %v743
        %v751 = vadd.f32 %v750, 1e-05
        %v752 = vrsqrt.pop %v751
        %v753 = vmul.f32 %v752, %v751
        %v754 = vmul.f32 %v753, %v752
        %v755 = vmul.f32 0.5, %v754
        %v756 = vsub.f32 1.5, %v755
        %v757 = vmul.f32 %v752, %v756
        %vm758 = vweird.f32 %v751
        %vm759 = vweird.f32 %v752
        %vm760 = vmor %vm758, %vm759
        %v761 = vsel %vm760, %v752, %v757
        %v762 = vmul.f32 %v745, %v761
        %v763 = vld [vmem:[%s4] sm:$0xff]
        %v764 = vld [vmem:[%s4 + $0x8] sm:$0xff]
        %v765 = vld [vmem:[%s4 + $0x10] sm:$0xff]
        %v766 = vld [vmem:[%s4 + $0x18] sm:$0xff]
        %v768 = vsel %vm342, %v762, 0
        %770 = vmatpush.msra.mxu0 0.0
        %771 = vmatpush.msra.mxu0 0.0
        %772 = vmatpush.msra.mxu0 0.0
        %773 = vmatpush.msra.mxu0 0.0
        %774 = vmatpush.msra.mxu0 0.0
        %775 = vmatpush.msra.mxu0 0.0
        %776 = vmatpush.msra.mxu0 0.0
        %777 = vmatpush.msra.mxu0 0.0
        %778 = vmatpush.msra.mxu0 0.0
        %779 = vmatpush.msra.mxu0 0.0
        %780 = vmatpush.msra.mxu0 0.0
        %781 = vmatpush.msra.mxu0 0.0
        %782 = vmatpush.msra.mxu0 %v766
        %783 = vmatpush.msra.mxu0 %v765
        %784 = vmatpush.msra.mxu0 %v764
        %785 = vmatpush.msra.mxu0 %v763
        %786 = vmatmul.f32.gmra.mxu0 %v768
        %v787 = vpop.f32.mrf.mxu0
        %v788 = vadd.f32 0.0, %v787
        %789 = vdwg.mxu0
        %v790 = vmax.f32 %v788, 0.0
        %v791 = vld [vmem:[%s5] sm:$0xff]
        %v792 = vld [vmem:[%s5 + $0x8] sm:$0xff]
        %v793 = vld [vmem:[%s5 + $0x10] sm:$0xff]
        %v794 = vld [vmem:[%s5 + $0x18] sm:$0xff]
        %v795 = vld [vmem:[%s5 + $0x20] sm:$0xff]
        %v796 = vld [vmem:[%s5 + $0x28] sm:$0xff]
        %v797 = vld [vmem:[%s5 + $0x30] sm:$0xff]
        %v798 = vld [vmem:[%s5 + $0x38] sm:$0xff]
        %vm799 = vcmask 523264
        %v801 = vsel %vm799, %v790, 0
        %803 = vmatpush.msra.mxu0 0.0
        %804 = vmatpush.msra.mxu0 0.0
        %805 = vmatpush.msra.mxu0 0.0
        %806 = vmatpush.msra.mxu0 0.0
        %807 = vmatpush.msra.mxu0 0.0
        %808 = vmatpush.msra.mxu0 0.0
        %809 = vmatpush.msra.mxu0 0.0
        %810 = vmatpush.msra.mxu0 0.0
        %811 = vmatpush.msra.mxu0 %v798
        %812 = vmatpush.msra.mxu0 %v797
        %813 = vmatpush.msra.mxu0 %v796
        %814 = vmatpush.msra.mxu0 %v795
        %815 = vmatpush.msra.mxu0 %v794
        %816 = vmatpush.msra.mxu0 %v793
        %817 = vmatpush.msra.mxu0 %v792
        %818 = vmatpush.msra.mxu0 %v791
        %819 = vmatmul.f32.gmra.mxu0 %v801
        %v820 = vpop.f32.mrf.mxu0
        %v821 = vadd.f32 %v762, %v820
        %822 = vdwg.mxu0
        %v823 = vsel %vm342, %v821, 0.0
        %824 = vadd.xlane.f32.xlu0 %v823
        %v825 = vpop.xlane.xlu0 %824
        %v826 = vmul.f32 %v825, %v743
        %v827 = vsub.f32 %v821, %v826
        %v828 = vmul.f32 %v827, %v827
        %v829 = vsel %vm342, %v828, 0.0
        %830 = vadd.xlane.f32.xlu0 %v829
        %v831 = vpop.xlane.xlu0 %830
        %v832 = vmul.f32 %v831, %v743
        %v833 = vadd.f32 %v832, 1e-05
        %v834 = vrsqrt.pop %v833
        %v835 = vmul.f32 %v834, %v833
        %v836 = vmul.f32 %v835, %v834
        %v837 = vmul.f32 0.5, %v836
        %v838 = vsub.f32 1.5, %v837
        %v839 = vmul.f32 %v834, %v838
        %vm840 = vweird.f32 %v833
        %vm841 = vweird.f32 %v834
        %vm842 = vmor %vm840, %vm841
        %v843 = vsel %vm842, %v834, %v839
        %v844 = vmul.f32 %v827, %v843
        %s845 = scalar_lea.vmem %s2, 32
        %v846 = vld [vmem:[%s845] sm:$0xff]
        %v847 = vld [vmem:[%s845 + $0x8] sm:$0xff]
        %v848 = vld [vmem:[%s845 + $0x10] sm:$0xff]
        %v849 = vld [vmem:[%s845 + $0x18] sm:$0xff]
        %v851 = vsel %vm342, %v844, 0
        %853 = vmatpush.msra.mxu0 0.0
        %854 = vmatpush.msra.mxu0 0.0
        %855 = vmatpush.msra.mxu0 0.0
        %856 = vmatpush.msra.mxu0 0.0
        %857 = vmatpush.msra.mxu0 0.0
        %858 = vmatpush.msra.mxu0 0.0
        %859 = vmatpush.msra.mxu0 0.0
        %860 = vmatpush.msra.mxu0 0.0
        %861 = vmatpush.msra.mxu0 0.0
        %862 = vmatpush.msra.mxu0 0.0
        %863 = vmatpush.msra.mxu0 0.0
        %864 = vmatpush.msra.mxu0 0.0
        %865 = vmatpush.msra.mxu0 %v849
        %866 = vmatpush.msra.mxu0 %v848
        %867 = vmatpush.msra.mxu0 %v847
        %868 = vmatpush.msra.mxu0 %v846
        %869 = vmatmul.f32.gmra.mxu0 %v851
        %v870 = vpop.f32.mrf.mxu0
        %v871 = vadd.f32 0.0, %v870
        %872 = vdwg.mxu0
        %874 = vrot.lane.b32.xlu0 %v871, 120
        %v875 = vpop.permute.xlu0 %874
        %876 = vrot.lane.b32.xlu0 %v871, 112
        %v877 = vpop.permute.xlu0 %876
        %878 = vrot.lane.b32.xlu0 %v871, 104
        %v879 = vpop.permute.xlu0 %878
        %880 = vrot.lane.b32.xlu0 %v871, 96
        %v881 = vpop.permute.xlu0 %880
        %v882 = vsel %vm375, %v871, 0
        %v884 = vsel %vm375, %v881, 0
        %886 = vmatpush.xpose.msra.mxu0 0.0
        %887 = vmatpush.xpose.msra.mxu0 0.0
        %888 = vmatpush.xpose.msra.mxu0 0.0
        %889 = vmatpush.xpose.msra.mxu0 0.0
        %890 = vmatpush.xpose.msra.mxu0 0.0
        %891 = vmatpush.xpose.msra.mxu0 0.0
        %892 = vmatpush.xpose.msra.mxu0 0.0
        %893 = vmatpush.xpose.msra.mxu0 0.0
        %894 = vmatpush.xpose.msra.mxu0 0.0
        %895 = vmatpush.xpose.msra.mxu0 0.0
        %896 = vmatpush.xpose.msra.mxu0 0.0
        %897 = vmatpush.xpose.msra.mxu0 0.0
        %898 = vmatpush.xpose.msra.mxu0 0.0
        %899 = vmatpush.xpose.msra.mxu0 0.0
        %900 = vmatpush.xpose.msra.mxu0 0.0
        %901 = vmatpush.xpose.msra.mxu0 %v884
        %902 = vmatmul.f32.gmra.mxu0 %v882
        %v903 = vpop.f32.mrf.mxu0
        %v904 = vadd.f32 %v337, %v903
        %905 = vdwg.mxu0
        %906 = vrot.lane.b32.xlu0 %v875, 96
        %v907 = vpop.permute.xlu0 %906
        %v908 = vsel %vm375, %v875, 0
        %v910 = vsel %vm375, %v907, 0
        %912 = vmatpush.xpose.msra.mxu0 0.0
        %913 = vmatpush.xpose.msra.mxu0 0.0
        %914 = vmatpush.xpose.msra.mxu0 0.0
        %915 = vmatpush.xpose.msra.mxu0 0.0
        %916 = vmatpush.xpose.msra.mxu0 0.0
        %917 = vmatpush.xpose.msra.mxu0 0.0
        %918 = vmatpush.xpose.msra.mxu0 0.0
        %919 = vmatpush.xpose.msra.mxu0 0.0
        %920 = vmatpush.xpose.msra.mxu0 0.0
        %921 = vmatpush.xpose.msra.mxu0 0.0
        %922 = vmatpush.xpose.msra.mxu0 0.0
        %923 = vmatpush.xpose.msra.mxu0 0.0
        %924 = vmatpush.xpose.msra.mxu0 0.0
        %925 = vmatpush.xpose.msra.mxu0 0.0
        %926 = vmatpush.xpose.msra.mxu0 0.0
        %927 = vmatpush.xpose.msra.mxu0 %v910
        %928 = vmatmul.f32.gmra.mxu0 %v908
        %v929 = vpop.f32.mrf.mxu0
        %v930 = vadd.f32 %v337, %v929
        %931 = vdwg.mxu0
        %932 = vrot.lane.b32.xlu0 %v877, 96
        %v933 = vpop.permute.xlu0 %932
        %v934 = vsel %vm375, %v877, 0
        %v936 = vsel %vm375, %v933, 0
        %938 = vmatpush.xpose.msra.mxu0 0.0
        %939 = vmatpush.xpose.msra.mxu0 0.0
        %940 = vmatpush.xpose.msra.mxu0 0.0
        %941 = vmatpush.xpose.msra.mxu0 0.0
        %942 = vmatpush.xpose.msra.mxu0 0.0
        %943 = vmatpush.xpose.msra.mxu0 0.0
        %944 = vmatpush.xpose.msra.mxu0 0.0
        %945 = vmatpush.xpose.msra.mxu0 0.0
        %946 = vmatpush.xpose.msra.mxu0 0.0
        %947 = vmatpush.xpose.msra.mxu0 0.0
        %948 = vmatpush.xpose.msra.mxu0 0.0
        %949 = vmatpush.xpose.msra.mxu0 0.0
        %950 = vmatpush.xpose.msra.mxu0 0.0
        %951 = vmatpush.xpose.msra.mxu0 0.0
        %952 = vmatpush.xpose.msra.mxu0 0.0
        %953 = vmatpush.xpose.msra.mxu0 %v936
        %954 = vmatmul.f32.gmra.mxu0 %v934
        %v955 = vpop.f32.mrf.mxu0
        %v956 = vadd.f32 %v337, %v955
        %957 = vdwg.mxu0
        %958 = vrot.lane.b32.xlu0 %v879, 96
        %v959 = vpop.permute.xlu0 %958
        %v960 = vsel %vm375, %v879, 0
        %v962 = vsel %vm375, %v959, 0
        %964 = vmatpush.xpose.msra.mxu0 0.0
        %965 = vmatpush.xpose.msra.mxu0 0.0
        %966 = vmatpush.xpose.msra.mxu0 0.0
        %967 = vmatpush.xpose.msra.mxu0 0.0
        %968 = vmatpush.xpose.msra.mxu0 0.0
        %969 = vmatpush.xpose.msra.mxu0 0.0
        %970 = vmatpush.xpose.msra.mxu0 0.0
        %971 = vmatpush.xpose.msra.mxu0 0.0
        %972 = vmatpush.xpose.msra.mxu0 0.0
        %973 = vmatpush.xpose.msra.mxu0 0.0
        %974 = vmatpush.xpose.msra.mxu0 0.0
        %975 = vmatpush.xpose.msra.mxu0 0.0
        %976 = vmatpush.xpose.msra.mxu0 0.0
        %977 = vmatpush.xpose.msra.mxu0 0.0
        %978 = vmatpush.xpose.msra.mxu0 0.0
        %979 = vmatpush.xpose.msra.mxu0 %v962
        %980 = vmatmul.f32.gmra.mxu0 %v960
        %v981 = vpop.f32.mrf.mxu0
        %v982 = vadd.f32 %v337, %v981
        %983 = vdwg.mxu0
        %v984 = vsel %vm375, %v904, -inf
        %985 = vmax.xlane.f32.xlu0 %v984
        %v986 = vpop.xlane.xlu0 %985
        %v987 = vsel %vm375, %v930, -inf
        %988 = vmax.xlane.f32.xlu0 %v987
        %v989 = vpop.xlane.xlu0 %988
        %v990 = vsel %vm375, %v956, -inf
        %991 = vmax.xlane.f32.xlu0 %v990
        %v992 = vpop.xlane.xlu0 %991
        %v993 = vsel %vm375, %v982, -inf
        %994 = vmax.xlane.f32.xlu0 %v993
        %v995 = vpop.xlane.xlu0 %994
        %v996 = vsub.f32 %v904, %v986
        %v997 = vsub.f32 %v930, %v989
        %v998 = vsub.f32 %v956, %v992
        %v999 = vsub.f32 %v982, %v995
        %v1000 = vmul.f32 %v996, 1.442695
        %v1001 = vpow.pop %v1000
        %v1002 = vmul.f32 %v997, 1.442695
        %v1003 = vpow.pop %v1002
        %v1004 = vmul.f32 %v998, 1.442695
        %v1005 = vpow.pop %v1004
        %v1006 = vmul.f32 %v999, 1.442695
        %v1007 = vpow.pop %v1006
        %v1008 = vsel %vm375, %v1001, 0.0
        %1009 = vadd.xlane.f32.xlu0 %v1008
        %v1010 = vpop.xlane.xlu0 %1009
        %v1011 = vsel %vm375, %v1003, 0.0
        %1012 = vadd.xlane.f32.xlu0 %v1011
        %v1013 = vpop.xlane.xlu0 %1012
        %v1014 = vsel %vm375, %v1005, 0.0
        %1015 = vadd.xlane.f32.xlu0 %v1014
        %v1016 = vpop.xlane.xlu0 %1015
        %v1017 = vsel %vm375, %v1007, 0.0
        %1018 = vadd.xlane.f32.xlu0 %v1017
        %v1019 = vpop.xlane.xlu0 %1018
        %v1020 = vrcp.pop %v1010
        %v1021 = vrcp.pop %v1013
        %v1022 = vrcp.pop %v1016
        %v1023 = vrcp.pop %v1019
        %v1024 = vmul.f32 %v1001, %v1020
        %v1025 = vmul.f32 %v1003, %v1021
        %v1026 = vmul.f32 %v1005, %v1022
        %v1027 = vmul.f32 %v1007, %v1023
        %1028 = vst.msk [vmem:[%s327] sm:$0xff] %vm375, %v1024
        %1029 = vst.msk [vmem:[%s327 + $0x8] sm:$0xff] %vm375, %v1025
        %1030 = vst.msk [vmem:[%s327 + $0x10] sm:$0xff] %vm375, %v1026
        %1031 = vst.msk [vmem:[%s327 + $0x18] sm:$0xff] %vm375, %v1027
        %1032 = vrot.lane.b32.xlu0 %v871, 64
        %v1033 = vpop.permute.xlu0 %1032
        %v1036 = vsel %vm375, %v1024, 0
        %1038 = vmatpush.msra.mxu0 0.0
        %1039 = vmatpush.msra.mxu0 0.0
        %1040 = vmatpush.msra.mxu0 0.0
        %1041 = vmatpush.msra.mxu0 0.0
        %1042 = vmatpush.msra.mxu0 0.0
        %1043 = vmatpush.msra.mxu0 0.0
        %1044 = vmatpush.msra.mxu0 0.0
        %1045 = vmatpush.msra.mxu0 0.0
        %1046 = vmatpush.msra.mxu0 0.0
        %1047 = vmatpush.msra.mxu0 0.0
        %1048 = vmatpush.msra.mxu0 0.0
        %1049 = vmatpush.msra.mxu0 0.0
        %1050 = vmatpush.msra.mxu0 0.0
        %1051 = vmatpush.msra.mxu0 0.0
        %1052 = vmatpush.msra.mxu0 0.0
        %1053 = vmatpush.msra.mxu0 %v1033
        %1054 = vmatmul.f32.gmra.mxu0 %v1036
        %v1055 = vpop.f32.mrf.mxu0
        %v1056 = vadd.f32 0.0, %v1055
        %1057 = vdwg.mxu0
        %1058 = vrot.lane.b32.xlu0 %v875, 64
        %v1059 = vpop.permute.xlu0 %1058
        %v1062 = vsel %vm375, %v1025, 0
        %1064 = vmatpush.msra.mxu0 0.0
        %1065 = vmatpush.msra.mxu0 0.0
        %1066 = vmatpush.msra.mxu0 0.0
        %1067 = vmatpush.msra.mxu0 0.0
        %1068 = vmatpush.msra.mxu0 0.0
        %1069 = vmatpush.msra.mxu0 0.0
        %1070 = vmatpush.msra.mxu0 0.0
        %1071 = vmatpush.msra.mxu0 0.0
        %1072 = vmatpush.msra.mxu0 0.0
        %1073 = vmatpush.msra.mxu0 0.0
        %1074 = vmatpush.msra.mxu0 0.0
        %1075 = vmatpush.msra.mxu0 0.0
        %1076 = vmatpush.msra.mxu0 0.0
        %1077 = vmatpush.msra.mxu0 0.0
        %1078 = vmatpush.msra.mxu0 0.0
        %1079 = vmatpush.msra.mxu0 %v1059
        %1080 = vmatmul.f32.gmra.mxu0 %v1062
        %v1081 = vpop.f32.mrf.mxu0
        %v1082 = vadd.f32 0.0, %v1081
        %1083 = vdwg.mxu0
        %1084 = vrot.lane.b32.xlu0 %v877, 64
        %v1085 = vpop.permute.xlu0 %1084
        %v1088 = vsel %vm375, %v1026, 0
        %1090 = vmatpush.msra.mxu0 0.0
        %1091 = vmatpush.msra.mxu0 0.0
        %1092 = vmatpush.msra.mxu0 0.0
        %1093 = vmatpush.msra.mxu0 0.0
        %1094 = vmatpush.msra.mxu0 0.0
        %1095 = vmatpush.msra.mxu0 0.0
        %1096 = vmatpush.msra.mxu0 0.0
        %1097 = vmatpush.msra.mxu0 0.0
        %1098 = vmatpush.msra.mxu0 0.0
        %1099 = vmatpush.msra.mxu0 0.0
        %1100 = vmatpush.msra.mxu0 0.0
        %1101 = vmatpush.msra.mxu0 0.0
        %1102 = vmatpush.msra.mxu0 0.0
        %1103 = vmatpush.msra.mxu0 0.0
        %1104 = vmatpush.msra.mxu0 0.0
        %1105 = vmatpush.msra.mxu0 %v1085
        %1106 = vmatmul.f32.gmra.mxu0 %v1088
        %v1107 = vpop.f32.mrf.mxu0
        %v1108 = vadd.f32 0.0, %v1107
        %1109 = vdwg.mxu0
        %1110 = vrot.lane.b32.xlu0 %v879, 64
        %v1111 = vpop.permute.xlu0 %1110
        %v1114 = vsel %vm375, %v1027, 0
        %1116 = vmatpush.msra.mxu0 0.0
        %1117 = vmatpush.msra.mxu0 0.0
        %1118 = vmatpush.msra.mxu0 0.0
        %1119 = vmatpush.msra.mxu0 0.0
        %1120 = vmatpush.msra.mxu0 0.0
        %1121 = vmatpush.msra.mxu0 0.0
        %1122 = vmatpush.msra.mxu0 0.0
        %1123 = vmatpush.msra.mxu0 0.0
        %1124 = vmatpush.msra.mxu0 0.0
        %1125 = vmatpush.msra.mxu0 0.0
        %1126 = vmatpush.msra.mxu0 0.0
        %1127 = vmatpush.msra.mxu0 0.0
        %1128 = vmatpush.msra.mxu0 0.0
        %1129 = vmatpush.msra.mxu0 0.0
        %1130 = vmatpush.msra.mxu0 0.0
        %1131 = vmatpush.msra.mxu0 %v1111
        %1132 = vmatmul.f32.gmra.mxu0 %v1114
        %v1133 = vpop.f32.mrf.mxu0
        %v1134 = vadd.f32 0.0, %v1133
        %1135 = vdwg.mxu0
        %s1136 = scalar_lea.vmem %s3, 32
        %v1137 = vld [vmem:[%s1136] sm:$0xff]
        %v1138 = vld [vmem:[%s1136 + $0x8] sm:$0xff]
        %v1139 = vld [vmem:[%s1136 + $0x10] sm:$0xff]
        %v1140 = vld [vmem:[%s1136 + $0x18] sm:$0xff]
        %v1142 = vsel %vm375, %v1056, 0
        %1144 = vmatpush.msra.mxu0 0.0
        %1145 = vmatpush.msra.mxu0 0.0
        %1146 = vmatpush.msra.mxu0 0.0
        %1147 = vmatpush.msra.mxu0 0.0
        %1148 = vmatpush.msra.mxu0 0.0
        %1149 = vmatpush.msra.mxu0 0.0
        %1150 = vmatpush.msra.mxu0 0.0
        %1151 = vmatpush.msra.mxu0 0.0
        %1152 = vmatpush.msra.mxu0 0.0
        %1153 = vmatpush.msra.mxu0 0.0
        %1154 = vmatpush.msra.mxu0 0.0
        %1155 = vmatpush.msra.mxu0 0.0
        %1156 = vmatpush.msra.mxu0 0.0
        %1157 = vmatpush.msra.mxu0 0.0
        %1158 = vmatpush.msra.mxu0 0.0
        %1159 = vmatpush.msra.mxu0 %v1137
        %1160 = vmatmul.f32.gmra.mxu0 %v1142
        %v1161 = vpop.f32.mrf.mxu0
        %v1162 = vadd.f32 0.0, %v1161
        %1163 = vdwg.mxu0
        %v1165 = vsel %vm375, %v1082, 0
        %1167 = vmatpush.msra.mxu0 0.0
        %1168 = vmatpush.msra.mxu0 0.0
        %1169 = vmatpush.msra.mxu0 0.0
        %1170 = vmatpush.msra.mxu0 0.0
        %1171 = vmatpush.msra.mxu0 0.0
        %1172 = vmatpush.msra.mxu0 0.0
        %1173 = vmatpush.msra.mxu0 0.0
        %1174 = vmatpush.msra.mxu0 0.0
        %1175 = vmatpush.msra.mxu0 0.0
        %1176 = vmatpush.msra.mxu0 0.0
        %1177 = vmatpush.msra.mxu0 0.0
        %1178 = vmatpush.msra.mxu0 0.0
        %1179 = vmatpush.msra.mxu0 0.0
        %1180 = vmatpush.msra.mxu0 0.0
        %1181 = vmatpush.msra.mxu0 0.0
        %1182 = vmatpush.msra.mxu0 %v1138
        %1183 = vmatmul.f32.gmra.mxu0 %v1165
        %v1184 = vpop.f32.mrf.mxu0
        %v1185 = vadd.f32 0.0, %v1184
        %1186 = vdwg.mxu0
        %v1188 = vsel %vm375, %v1108, 0
        %1190 = vmatpush.msra.mxu0 0.0
        %1191 = vmatpush.msra.mxu0 0.0
        %1192 = vmatpush.msra.mxu0 0.0
        %1193 = vmatpush.msra.mxu0 0.0
        %1194 = vmatpush.msra.mxu0 0.0
        %1195 = vmatpush.msra.mxu0 0.0
        %1196 = vmatpush.msra.mxu0 0.0
        %1197 = vmatpush.msra.mxu0 0.0
        %1198 = vmatpush.msra.mxu0 0.0
        %1199 = vmatpush.msra.mxu0 0.0
        %1200 = vmatpush.msra.mxu0 0.0
        %1201 = vmatpush.msra.mxu0 0.0
        %1202 = vmatpush.msra.mxu0 0.0
        %1203 = vmatpush.msra.mxu0 0.0
        %1204 = vmatpush.msra.mxu0 0.0
        %1205 = vmatpush.msra.mxu0 %v1139
        %1206 = vmatmul.f32.gmra.mxu0 %v1188
        %v1207 = vpop.f32.mrf.mxu0
        %v1208 = vadd.f32 0.0, %v1207
        %1209 = vdwg.mxu0
        %v1211 = vsel %vm375, %v1134, 0
        %1213 = vmatpush.msra.mxu0 0.0
        %1214 = vmatpush.msra.mxu0 0.0
        %1215 = vmatpush.msra.mxu0 0.0
        %1216 = vmatpush.msra.mxu0 0.0
        %1217 = vmatpush.msra.mxu0 0.0
        %1218 = vmatpush.msra.mxu0 0.0
        %1219 = vmatpush.msra.mxu0 0.0
        %1220 = vmatpush.msra.mxu0 0.0
        %1221 = vmatpush.msra.mxu0 0.0
        %1222 = vmatpush.msra.mxu0 0.0
        %1223 = vmatpush.msra.mxu0 0.0
        %1224 = vmatpush.msra.mxu0 0.0
        %1225 = vmatpush.msra.mxu0 0.0
        %1226 = vmatpush.msra.mxu0 0.0
        %1227 = vmatpush.msra.mxu0 0.0
        %1228 = vmatpush.msra.mxu0 %v1140
        %1229 = vmatmul.f32.gmra.mxu0 %v1211
        %v1230 = vpop.f32.mrf.mxu0
        %v1231 = vadd.f32 0.0, %v1230
        %1232 = vdwg.mxu0
        %v1233 = vsel %vm342, %v1162, 0.0
        %v1234 = vsel %vm342, %v1185, 0.0
        %v1235 = vadd.f32 %v1233, %v1234
        %v1236 = vsel %vm342, %v1208, 0.0
        %v1237 = vadd.f32 %v1235, %v1236
        %v1238 = vsel %vm342, %v1231, 0.0
        %v1239 = vadd.f32 %v1237, %v1238
        %v1240 = vadd.f32 %v1239, %v844
        %v1241 = vsel %vm342, %v1240, 0.0
        %1242 = vadd.xlane.f32.xlu0 %v1241
        %v1243 = vpop.xlane.xlu0 %1242
        %v1244 = vmul.f32 %v1243, %v743
        %v1245 = vsub.f32 %v1240, %v1244
        %v1246 = vmul.f32 %v1245, %v1245
        %v1247 = vsel %vm342, %v1246, 0.0
        %1248 = vadd.xlane.f32.xlu0 %v1247
        %v1249 = vpop.xlane.xlu0 %1248
        %v1250 = vmul.f32 %v1249, %v743
        %v1251 = vadd.f32 %v1250, 1e-05
        %v1252 = vrsqrt.pop %v1251
        %v1253 = vmul.f32 %v1252, %v1251
        %v1254 = vmul.f32 %v1253, %v1252
        %v1255 = vmul.f32 0.5, %v1254
        %v1256 = vsub.f32 1.5, %v1255
        %v1257 = vmul.f32 %v1252, %v1256
        %vm1258 = vweird.f32 %v1251
        %vm1259 = vweird.f32 %v1252
        %vm1260 = vmor %vm1258, %vm1259
        %v1261 = vsel %vm1260, %v1252, %v1257
        %v1262 = vmul.f32 %v1245, %v1261
        %s1263 = scalar_lea.vmem %s4, 32
        %v1264 = vld [vmem:[%s1263] sm:$0xff]
        %v1265 = vld [vmem:[%s1263 + $0x8] sm:$0xff]
        %v1266 = vld [vmem:[%s1263 + $0x10] sm:$0xff]
        %v1267 = vld [vmem:[%s1263 + $0x18] sm:$0xff]
        %v1269 = vsel %vm342, %v1262, 0
        %1271 = vmatpush.msra.mxu0 0.0
        %1272 = vmatpush.msra.mxu0 0.0
        %1273 = vmatpush.msra.mxu0 0.0
        %1274 = vmatpush.msra.mxu0 0.0
        %1275 = vmatpush.msra.mxu0 0.0
        %1276 = vmatpush.msra.mxu0 0.0
        %1277 = vmatpush.msra.mxu0 0.0
        %1278 = vmatpush.msra.mxu0 0.0
        %1279 = vmatpush.msra.mxu0 0.0
        %1280 = vmatpush.msra.mxu0 0.0
        %1281 = vmatpush.msra.mxu0 0.0
        %1282 = vmatpush.msra.mxu0 0.0
        %1283 = vmatpush.msra.mxu0 %v1267
        %1284 = vmatpush.msra.mxu0 %v1266
        %1285 = vmatpush.msra.mxu0 %v1265
        %1286 = vmatpush.msra.mxu0 %v1264
        %1287 = vmatmul.f32.gmra.mxu0 %v1269
        %v1288 = vpop.f32.mrf.mxu0
        %v1289 = vadd.f32 0.0, %v1288
        %1290 = vdwg.mxu0
        %v1291 = vmax.f32 %v1289, 0.0
        %s1292 = scalar_lea.vmem %s5, 64
        %v1293 = vld [vmem:[%s1292] sm:$0xff]
        %v1294 = vld [vmem:[%s1292 + $0x8] sm:$0xff]
        %v1295 = vld [vmem:[%s1292 + $0x10] sm:$0xff]
        %v1296 = vld [vmem:[%s1292 + $0x18] sm:$0xff]
        %v1297 = vld [vmem:[%s1292 + $0x20] sm:$0xff]
        %v1298 = vld [vmem:[%s1292 + $0x28] sm:$0xff]
        %v1299 = vld [vmem:[%s1292 + $0x30] sm:$0xff]
        %v1300 = vld [vmem:[%s1292 + $0x38] sm:$0xff]
        %v1302 = vsel %vm799, %v1291, 0
        %1304 = vmatpush.msra.mxu0 0.0
        %1305 = vmatpush.msra.mxu0 0.0
        %1306 = vmatpush.msra.mxu0 0.0
        %1307 = vmatpush.msra.mxu0 0.0
        %1308 = vmatpush.msra.mxu0 0.0
        %1309 = vmatpush.msra.mxu0 0.0
        %1310 = vmatpush.msra.mxu0 0.0
        %1311 = vmatpush.msra.mxu0 0.0
        %1312 = vmatpush.msra.mxu0 %v1300
        %1313 = vmatpush.msra.mxu0 %v1299
        %1314 = vmatpush.msra.mxu0 %v1298
        %1315 = vmatpush.msra.mxu0 %v1297
        %1316 = vmatpush.msra.mxu0 %v1296
        %1317 = vmatpush.msra.mxu0 %v1295
        %1318 = vmatpush.msra.mxu0 %v1294
        %1319 = vmatpush.msra.mxu0 %v1293
        %1320 = vmatmul.f32.gmra.mxu0 %v1302
        %v1321 = vpop.f32.mrf.mxu0
        %v1322 = vadd.f32 %v1262, %v1321
        %1323 = vdwg.mxu0
        %v1324 = vsel %vm342, %v1322, 0.0
        %1325 = vadd.xlane.f32.xlu0 %v1324
        %v1326 = vpop.xlane.xlu0 %1325
        %v1327 = vmul.f32 %v1326, %v743
        %v1328 = vsub.f32 %v1322, %v1327
        %v1329 = vmul.f32 %v1328, %v1328
        %v1330 = vsel %vm342, %v1329, 0.0
        %1331 = vadd.xlane.f32.xlu0 %v1330
        %v1332 = vpop.xlane.xlu0 %1331
        %v1333 = vmul.f32 %v1332, %v743
        %v1334 = vadd.f32 %v1333, 1e-05
        %v1335 = vrsqrt.pop %v1334
        %v1336 = vmul.f32 %v1335, %v1334
        %v1337 = vmul.f32 %v1336, %v1335
        %v1338 = vmul.f32 0.5, %v1337
        %v1339 = vsub.f32 1.5, %v1338
        %v1340 = vmul.f32 %v1335, %v1339
        %vm1341 = vweird.f32 %v1334
        %vm1342 = vweird.f32 %v1335
        %vm1343 = vmor %vm1341, %vm1342
        %v1344 = vsel %vm1343, %v1335, %v1340
        %v1345 = vmul.f32 %v1328, %v1344
        %1346 = vst.msk [vmem:[%s313] sm:$0xff] %vm342, %v1345
        %s1347 = sand.u32 %s170, 1
        %s1348 = scalar_lea.sflag [#allocation3], %s1347
        %s1349 = sand.u32 %s170, 1
        %s1350 = smul.addr %s1349, 8
        %s1351 = scalar_lea.vmem [#allocation2], %s1350
        %s1352 = sand.u32 %s26, 1
        %s1353 = scalar_lea.sflag [#allocation5], %s1352
        %s1354 = sand.u32 %s196, 1
        %s1355 = smul.addr %s1354, 32
        %s1356 = scalar_lea.vmem [#allocation4], %s1355
        %s1357 = sand.u32 %s26, 1
        %s1358 = scalar_lea.sflag [#allocation5], %s1357
        %s1359 = sand.u32 %s222, 1
        %s1360 = smul.addr %s1359, 32
        %s1361 = scalar_lea.vmem [#allocation6], %s1360
        // Predicated region
        $region45: #{encoder_forward.1} parent=43 // pred_check
          %p1362 = pneg %p180
        $region46: #{encoder_forward.1} parent=43 // pred_check_branch
          %1364 = sbr.rel (%p1362) target = $region48
        $region47: #{encoder_forward.1} parent=43 // pred_region
          %1366 = vsyncadd %s1348, 0
          %s1367 = smul.addr %s26, 8
          %s1368 = scalar_lea.hbm %s6, %s1367
          %s1370 = sshll.u32 %s1351, 4
          %s1371 = int_to_ptr.vmem [resolvable:$true] %s1370
          %s1372 = sshll.u32 %s1368, 4
          %s1373 = int_to_ptr.hbm [resolvable:$true] %s1372
          %1375 = dma.vmem_to_hbm [thread:$0]  %s1371, 128, %s1373, %s1348
        $region48: #{encoder_forward.1} parent=43 // pred_fallthru
          _
        // Predicated region
        $region49: #{encoder_forward.1} parent=43 // pred_check
          %p1376 = pneg %p206
        $region50: #{encoder_forward.1} parent=43 // pred_check_branch
          %1378 = sbr.rel (%p1376) target = $region52
        $region51: #{encoder_forward.1} parent=43 // pred_region
          %1380 = vsyncadd %s1353, 0
          %s1381 = smul.addr %s26, 4
          %s1382 = smul.addr %s1381, 8
          %s1383 = scalar_lea.hbm %s7, %s1382
          %s1384 = sshll.u32 %s1356, 4
          %s1385 = int_to_ptr.vmem [resolvable:$true] %s1384
          %s1386 = sshll.u32 %s1383, 4
          %s1387 = int_to_ptr.hbm [resolvable:$true] %s1386
          %1392 = dma.vmem_to_hbm [thread:$0]  %s1385, 512, %s1387, %s1353, 128, 128, 8
        $region52: #{encoder_forward.1} parent=43 // pred_fallthru
          _
        // Predicated region
        $region53: #{encoder_forward.1} parent=43 // pred_check
          %p1393 = pneg %p232
        $region54: #{encoder_forward.1} parent=43 // pred_check_branch
          %1395 = sbr.rel (%p1393) target = $region56
        $region55: #{encoder_forward.1} parent=43 // pred_region
          %1397 = vsyncadd %s1358, 0
          %s1398 = smul.addr %s26, 4
          %s1399 = smul.addr %s1398, 8
          %s1400 = scalar_lea.hbm %s8, %s1399
          %s1401 = sshll.u32 %s1361, 4
          %s1402 = int_to_ptr.vmem [resolvable:$true] %s1401
          %s1403 = sshll.u32 %s1400, 4
          %s1404 = int_to_ptr.hbm [resolvable:$true] %s1403
          %1409 = dma.vmem_to_hbm [thread:$0]  %s1402, 512, %s1404, %s1358, 128, 128, 8
        $region56: #{encoder_forward.1} parent=43 // pred_fallthru
          _
      $region44: #{encoder_forward.1} parent=5 // pred_fallthru
        _
      %p1410 = scmp.le.s32.totalorder 2, %s21
      // Predicated region
      $region57: #{encoder_forward.1} parent=5 // pred_check
        %p1411 = pneg %p1410
      $region58: #{encoder_forward.1} parent=5 // pred_check_branch
        %1413 = sbr.rel (%p1411) target = $region60
      $region59: #{encoder_forward.1} parent=5 // pred_region
        %s1414 = ssub.s32 %s21, 2
        // Predicated region
        $region61: #{encoder_forward.1} parent=59 // pred_check
          %p1415 = pneg %p186
        $region62: #{encoder_forward.1} parent=59 // pred_check_branch
          %1417 = sbr.rel (%p1415) target = $region64
        $region63: #{encoder_forward.1} parent=59 // pred_region
          %s1418 = sand.u32 %s171, 1
          %s1419 = scalar_lea.sflag [#allocation3], %s1418
          %s1420 = sand.u32 %s171, 1
          %s1421 = smul.addr %s1420, 8
          %s1422 = scalar_lea.vmem [#allocation2], %s1421
          %1424 = dma.done %s1419, 128
        $region64: #{encoder_forward.1} parent=59 // pred_fallthru
          _
        // Predicated region
        $region65: #{encoder_forward.1} parent=59 // pred_check
          %p1425 = pneg %p212
        $region66: #{encoder_forward.1} parent=59 // pred_check_branch
          %1427 = sbr.rel (%p1425) target = $region68
        $region67: #{encoder_forward.1} parent=59 // pred_region
          %s1428 = sand.u32 %s27, 1
          %s1429 = scalar_lea.sflag [#allocation5], %s1428
          %s1430 = sand.u32 %s197, 1
          %s1431 = smul.addr %s1430, 32
          %s1432 = scalar_lea.vmem [#allocation4], %s1431
          %1434 = dma.done %s1429, 512
        $region68: #{encoder_forward.1} parent=59 // pred_fallthru
          _
        // Predicated region
        $region69: #{encoder_forward.1} parent=59 // pred_check
          %p1435 = pneg %p238
        $region70: #{encoder_forward.1} parent=59 // pred_check_branch
          %1437 = sbr.rel (%p1435) target = $region72
        $region71: #{encoder_forward.1} parent=59 // pred_region
          %s1438 = sand.u32 %s27, 1
          %s1439 = scalar_lea.sflag [#allocation5], %s1438
          %s1440 = sand.u32 %s223, 1
          %s1441 = smul.addr %s1440, 32
          %s1442 = scalar_lea.vmem [#allocation6], %s1441
          %1444 = dma.done %s1439, 512
        $region72: #{encoder_forward.1} parent=59 // pred_fallthru
          _
      $region60: #{encoder_forward.1} parent=5 // pred_fallthru
        _
    $region6: #{encoder_forward.1} parent=1 // loop_footer
      %s25 = sadd.s32 1, %s21
    $region7: #{encoder_forward.1} parent=1 // loop_footer_branch
      %20 = sbr.rel target = $region3
    $region8: #{encoder_forward.1} parent=1 // loop_exit
      _
    %1445 = vsyncpa [#allocation3], 1
    %s1446 = scalar_lea.sflag [#allocation3], 1
    %1447 = vsyncpa %s1446, 1
    %1448 = vsyncpa [#allocation5], 1
    %s1449 = scalar_lea.sflag [#allocation5], 1
    %1450 = vsyncpa %s1449, 1

</llo_original>
